<compile_context>
chip_gen: v5e
topology: v5e:2x2
jax: 0.10.0
libtpu: 0.0.40
codegen_flags: <defaults>
</compile_context>

<pallas_src>
import math
from functools import partial

import jax
import jax.numpy as jnp
from jax.experimental import pallas as pl
from jax.experimental.pallas import tpu as pltpu


LN_EPS = 1e-5  # PyTorch nn.LayerNorm default


# ----------------------------- in-kernel helpers -----------------------------

def _layernorm(x, gamma, beta, eps=LN_EPS):
    # PyTorch nn.LayerNorm semantics: biased variance, eps inside sqrt. (f32)
    mean = jnp.mean(x, axis=-1, keepdims=True)
    var = jnp.mean((x - mean) ** 2, axis=-1, keepdims=True)
    return (x - mean) * jax.lax.rsqrt(var + eps) * gamma + beta


def _erf(x):
    # Abramowitz & Stegun 7.1.26 polynomial, |abs err| < 1.5e-7.
    a1, a2, a3, a4, a5 = (0.254829592, -0.284496736, 1.421413741,
                          -1.453152027, 1.061405429)
    p = 0.3275911
    ax = jnp.abs(x)
    # divide routed to the EUP slot (approx reciprocal), frees VALU bundles
    t = pl.reciprocal(1.0 + p * ax, approx=True)
    poly = ((((a5 * t + a4) * t + a3) * t + a2) * t + a1) * t
    r = 1.0 - poly * jnp.exp(-ax * ax)
    return jnp.where(x >= 0, r, -r)


def _gelu(x):
    # Exact (erf) GELU, matching PyTorch nn.GELU() default.
    return 0.5 * x * (1.0 + _erf(x * (1.0 / math.sqrt(2.0))))


# ------------------------------- fused kernel --------------------------------

def vit_kernel(p_ref, pw_ref, pb_ref, pos_ref,
               g1_ref, bt1_ref, wqkv_ref, wo_ref, bo_ref,
               g2_ref, bt2_ref, w1_ref, b1_ref, w2_ref, b2_ref,
               o_ref, x_ref, *, depth, heads, dim_head, bb, n):
    # p_ref:    (Bb*N, patch_dim)  f32   patch slab for this batch block
    # pw_ref:   (patch_dim, D)     bf16  patch embedding weight   (Buffered(1))
    # pb_ref:   (1, D)             f32   patch embedding bias     (Buffered(1))
    # pos_ref:  (Bb*N, D)          f32   pos embedding, pre-tiled (Buffered(1))
    # per-layer refs carry a leading size-1 depth-block axis (streamed by l):
    #   g1/bt1/bo/g2/bt2/b2: (1,1,D)  wqkv: (1,D,3*inner)  wo: (1,inner,D)
    #   w1: (1,D,mlp)  b1: (1,1,mlp)  w2: (1,mlp,D)
    # o_ref:    (Bb*N, D)          bf16
    # x_ref:    (Bb*N, D)          f32   residual-stream carry (VMEM scratch)
    l = pl.program_id(1)
    inner = heads * dim_head
    bf16, f32 = jnp.bfloat16, jnp.float32

    # ---- patch embedding + positional embedding (first layer step only) ----
    @pl.when(l == 0)
    def _():
        x0 = jnp.dot(p_ref[...].astype(bf16), pw_ref[...],
                     preferred_element_type=f32)
        x_ref[...] = x0 + pb_ref[...] + pos_ref[...]
        # emb_dropout: identity (eval mode)

    x = x_ref[...]                                           # (Bb*N, D) f32

    # ---- PreNorm + multi-head self-attention + residual ----
    xn = _layernorm(x, g1_ref[0], bt1_ref[0])
    # Fused QKV projection: one MXU matmul, lane dim = 3*inner.
    # 1/sqrt(dim_head) is folded into Wq at parameter-prep time.
    qkv = jnp.dot(xn.astype(bf16), wqkv_ref[0],
                  preferred_element_type=f32).astype(bf16)   # (Bb*N, 3*inner)

    def head_slab(off):
        # Gather per-(image, head) tiles into one batched operand
        # (Bb*heads, N, dim_head) using only static slices + leading concat.
        slabs = []
        for b in range(bb):
            for h in range(heads):
                t = qkv[b * n:(b + 1) * n,
                        off + h * dim_head: off + (h + 1) * dim_head]
                slabs.append(t[None])
        return jnp.concatenate(slabs, axis=0)

    q = head_slab(0)
    k = head_slab(inner)
    v = head_slab(2 * inner)

    dots = jnp.einsum('gqd,gkd->gqk', q, k,
                      preferred_element_type=f32)            # (G, N, N) f32
    dots = dots - jnp.max(dots, axis=-1, keepdims=True)
    e = jnp.exp(dots)
    attn = e * pl.reciprocal(jnp.sum(e, axis=-1, keepdims=True), approx=True)
    out = jnp.einsum('gqk,gkd->gqd', attn.astype(bf16), v,
                     preferred_element_type=f32)             # (G, N, dh) f32

    # merge heads back to (Bb*N, inner), then one fused output projection
    rows = []
    for b in range(bb):
        cols = [out[b * heads + h] for h in range(heads)]
        rows.append(jnp.concatenate(cols, axis=-1))          # (N, inner)
    merged = jnp.concatenate(rows, axis=0).astype(bf16)      # (Bb*N, inner)

    proj = jnp.dot(merged, wo_ref[0], preferred_element_type=f32)
    x = x + proj + bo_ref[0]

    # ---- PreNorm + FeedForward (Linear -> GELU -> Linear) + residual ----
    xn2 = _layernorm(x, g2_ref[0], bt2_ref[0])
    h1 = jnp.dot(xn2.astype(bf16), w1_ref[0],
                 preferred_element_type=f32) + b1_ref[0]
    h1 = _gelu(h1)
    h2 = jnp.dot(h1.astype(bf16), w2_ref[0],
                 preferred_element_type=f32) + b2_ref[0]
    x = x + h2

    x_ref[...] = x                                           # carry to next layer

    @pl.when(l == depth - 1)
    def _():
        o_ref[...] = x.astype(o_ref.dtype)


# --------------------------------- wrapper ------------------------------------

def patchify(x, patch_size):
    # x: (B, C, H, W) -> (B, num_patches, p*p*C)
    # matches einops 'b c (h p1) (w p2) -> b (h w) (p1 p2 c)'
    B, C, H, W = x.shape
    p = patch_size
    h, w = H // p, W // p
    x = x.reshape(B, C, h, p, w, p)
    x = jnp.transpose(x, (0, 2, 4, 3, 5, 1))   # b h w p1 p2 c
    return x.reshape(B, h * w, p * p * C)


_LAYER_NAMES = ("g1", "bt1", "wqkv", "wo", "bo",
                "g2", "bt2", "w1", "b1", "w2", "b2")


def vit_forward(x_nchw, params, *, patch_size, heads, dim_head, depth,
                block_b=None, out_dtype=jnp.bfloat16):
    patches = patchify(x_nchw, patch_size)                 # (B, N, patch_dim)
    B, N, Pd = patches.shape
    D = params["patch_w"].shape[1]

    bb = B if block_b is None else block_b
    assert B % bb == 0, "batch must be divisible by the batch block"

    patches_flat = patches.reshape(B * N, Pd)              # lane-dense 2-D slab
    pos = jnp.tile(params["pos"][:N], (bb, 1))             # (bb*N, D), pre-tiled

    # constant-index inputs: fetched once, single-buffered
    def const_spec(shape):
        nd = len(shape)
        return pl.BlockSpec(shape, lambda b, l, _nd=nd: (0,) * _nd,
                            pipeline_mode=pl.Buffered(1))

    # per-layer stacked weights: stream one layer per depth grid step
    def layer_spec(shape):
        return pl.BlockSpec((1,) + shape[1:], lambda b, l: (l, 0, 0))

    in_specs = [pl.BlockSpec((bb * N, Pd), lambda b, l: (b, 0)),
                const_spec(params["patch_w"].shape),
                const_spec(params["patch_b"].shape),
                const_spec(pos.shape)]
    in_specs += [layer_spec(params[k].shape) for k in _LAYER_NAMES]

    out = pl.pallas_call(
        partial(vit_kernel, depth=depth, heads=heads, dim_head=dim_head,
                bb=bb, n=N),
        out_shape=jax.ShapeDtypeStruct((B * N, D), out_dtype),
        grid=(B // bb, depth),
        in_specs=in_specs,
        out_specs=pl.BlockSpec((bb * N, D), lambda b, l: (b, 0)),
        scratch_shapes=[pltpu.VMEM((bb * N, D), jnp.float32)],
        compiler_params=pltpu.CompilerParams(
            dimension_semantics=("parallel", "arbitrary"),
            vmem_limit_bytes=48 * 1024 * 1024),
    )(patches_flat, params["patch_w"], params["patch_b"], pos,
      *[params[k] for k in _LAYER_NAMES])
    return out.reshape(B, N, D)


# ------------------------------ parameter init --------------------------------

def init_params(key, *, image_size, patch_size, channels, dim, depth,
                heads, dim_head, mlp_dim):
    num_patches = (image_size // patch_size) ** 2
    patch_dim = channels * patch_size * patch_size
    inner = heads * dim_head
    scale = dim_head ** -0.5
    keys = iter(jax.random.split(key, 8 + depth * 12))
    f32, bf16 = jnp.float32, jnp.bfloat16
    nrm = lambda shp, s=0.02: (s * jax.random.normal(next(keys), shp)).astype(f32)

    params = {
        "patch_w": nrm((patch_dim, dim)).astype(bf16),
        "patch_b": nrm((1, dim)),
        # nn.Parameter(torch.randn(1, num_patches + 1, dim)); only [:, :n] is
        # used and no CLS token is prepended in this module's forward.
        "pos": jax.random.normal(next(keys), (num_patches + 1, dim)).astype(f32),
    }

    stacks = {k: [] for k in _LAYER_NAMES}
    for _ in range(depth):
        wq = nrm((dim, inner)) * scale          # fold 1/sqrt(dim_head) into Wq
        wk = nrm((dim, inner))
        wv = nrm((dim, inner))
        stacks["g1"].append(jnp.ones((1, dim), f32))
        stacks["bt1"].append(jnp.zeros((1, dim), f32))
        stacks["wqkv"].append(jnp.concatenate([wq, wk, wv], axis=1).astype(bf16))
        stacks["wo"].append(nrm((inner, dim)).astype(bf16))
        stacks["bo"].append(nrm((1, dim)))
        stacks["g2"].append(jnp.ones((1, dim), f32))
        stacks["bt2"].append(jnp.zeros((1, dim), f32))
        stacks["w1"].append(nrm((dim, mlp_dim)).astype(bf16))
        stacks["b1"].append(nrm((1, mlp_dim)))
        stacks["w2"].append(nrm((mlp_dim, dim)).astype(bf16))
        stacks["b2"].append(nrm((1, dim)))
    for k in _LAYER_NAMES:
        params[k] = jnp.stack(stacks[k])        # leading `depth` axis
    return params


# ----------------------------------- main -------------------------------------

if __name__ == "__main__":
    # Small ViT config: image 16x16, patch 4 -> 16 patches of dim 48.
    B, C, IMG, P = 2, 3, 16, 4
    DIM, DEPTH, HEADS, DIM_HEAD, MLP = 32, 2, 2, 16, 64

    key = jax.random.PRNGKey(0)
    k_x, k_p = jax.random.split(key)
    x = jax.random.normal(k_x, (B, C, IMG, IMG), dtype=jnp.float32)

    params = init_params(k_p, image_size=IMG, patch_size=P, channels=C,
                         dim=DIM, depth=DEPTH, heads=HEADS,
                         dim_head=DIM_HEAD, mlp_dim=MLP)

    out = vit_forward(x, params, patch_size=P, heads=HEADS,
                      dim_head=DIM_HEAD, depth=DEPTH)
    out = jax.block_until_ready(out)
    assert out.shape == (B, (IMG // P) ** 2, DIM)
    assert bool(jnp.all(jnp.isfinite(out.astype(jnp.float32))))
    print("KERNEL_OK")
</pallas_src>

<mosaic_0001>
module attributes {stable_mosaic.version = 11 : i64} {
  func.func @vit_kernel(%arg0: i32, %arg1: i32, %arg2: memref<32x48xf32, #tpu.memory_space<vmem>>, %arg3: memref<48x32xbf16, #tpu.memory_space<vmem>>, %arg4: memref<1x32xf32, #tpu.memory_space<vmem>>, %arg5: memref<32x32xf32, #tpu.memory_space<vmem>>, %arg6: memref<1x1x32xf32, #tpu.memory_space<vmem>>, %arg7: memref<1x1x32xf32, #tpu.memory_space<vmem>>, %arg8: memref<1x32x96xbf16, #tpu.memory_space<vmem>>, %arg9: memref<1x32x32xbf16, #tpu.memory_space<vmem>>, %arg10: memref<1x1x32xf32, #tpu.memory_space<vmem>>, %arg11: memref<1x1x32xf32, #tpu.memory_space<vmem>>, %arg12: memref<1x1x32xf32, #tpu.memory_space<vmem>>, %arg13: memref<1x32x64xbf16, #tpu.memory_space<vmem>>, %arg14: memref<1x1x64xf32, #tpu.memory_space<vmem>>, %arg15: memref<1x64x32xbf16, #tpu.memory_space<vmem>>, %arg16: memref<1x1x32xf32, #tpu.memory_space<vmem>>, %arg17: memref<32x32xbf16, #tpu.memory_space<vmem>>, %arg18: memref<32x32xf32, #tpu.memory_space<vmem>>) attributes {dimension_semantics = [#tpu.dimension_semantics<parallel>, #tpu.dimension_semantics<arbitrary>], iteration_bounds = array<i64: 1, 2>, scalar_prefetch = 0 : i64, scratch_operands = 1 : i64, tpu.core_type = #tpu.core_type<tc>, window_params = [{transform_indices = @transform_0, window_bounds = array<i64: 32, 48>}, {pipeline_mode = #tpu.pipeline_mode<synchronous>, transform_indices = @transform_1, window_bounds = array<i64: 48, 32>}, {pipeline_mode = #tpu.pipeline_mode<synchronous>, transform_indices = @transform_2, window_bounds = array<i64: 1, 32>}, {pipeline_mode = #tpu.pipeline_mode<synchronous>, transform_indices = @transform_3, window_bounds = array<i64: 32, 32>}, {transform_indices = @transform_4, window_bounds = array<i64: 1, 1, 32>}, {transform_indices = @transform_5, window_bounds = array<i64: 1, 1, 32>}, {transform_indices = @transform_6, window_bounds = array<i64: 1, 32, 96>}, {transform_indices = @transform_7, window_bounds = array<i64: 1, 32, 32>}, {transform_indices = @transform_8, window_bounds = array<i64: 1, 1, 32>}, {transform_indices = @transform_9, window_bounds = array<i64: 1, 1, 32>}, {transform_indices = @transform_10, window_bounds = array<i64: 1, 1, 32>}, {transform_indices = @transform_11, window_bounds = array<i64: 1, 32, 64>}, {transform_indices = @transform_12, window_bounds = array<i64: 1, 1, 64>}, {transform_indices = @transform_13, window_bounds = array<i64: 1, 64, 32>}, {transform_indices = @transform_14, window_bounds = array<i64: 1, 1, 32>}, {transform_indices = @transform_15, window_bounds = array<i64: 32, 32>}]} {
    %c0_i32 = arith.constant 0 : i32
    %0 = arith.cmpi eq, %arg1, %c0_i32 : i32
    %1 = arith.extui %0 : i1 to i32
    %c0_i32_0 = arith.constant 0 : i32
    %2 = arith.cmpi ne, %1, %c0_i32_0 : i32
    scf.if %2 {
      %c0_69 = arith.constant 0 : index
      %c0_70 = arith.constant 0 : index
      %181 = vector.load %arg2[%c0_69, %c0_70] : memref<32x48xf32, #tpu.memory_space<vmem>>, vector<32x48xf32>
      %182 = arith.truncf %181 : vector<32x48xf32> to vector<32x48xbf16>
      %c0_71 = arith.constant 0 : index
      %c0_72 = arith.constant 0 : index
      %183 = vector.load %arg3[%c0_71, %c0_72] : memref<48x32xbf16, #tpu.memory_space<vmem>>, vector<48x32xbf16>
      %cst_73 = arith.constant dense<0.000000e+00> : vector<32x32xf32>
      %184 = tpu.matmul %182, %183, %cst_73 {dimension_numbers = #tpu.dot_dimension_numbers<[1], [0], [0], [1], [0, 0, 1, 1], [], []>} : vector<32x48xbf16>, vector<48x32xbf16>, vector<32x32xf32> -> vector<32x32xf32>
      %c0_74 = arith.constant 0 : index
      %c0_75 = arith.constant 0 : index
      %185 = vector.load %arg4[%c0_74, %c0_75] : memref<1x32xf32, #tpu.memory_space<vmem>>, vector<1x32xf32>
      %186 = vector.broadcast %185 : vector<1x32xf32> to vector<32x32xf32>
      %187 = arith.addf %184, %186 : vector<32x32xf32>
      %c0_76 = arith.constant 0 : index
      %c0_77 = arith.constant 0 : index
      %188 = vector.load %arg5[%c0_76, %c0_77] : memref<32x32xf32, #tpu.memory_space<vmem>>, vector<32x32xf32>
      %189 = arith.addf %187, %188 : vector<32x32xf32>
      %c0_78 = arith.constant 0 : index
      %c0_79 = arith.constant 0 : index
      %190 = vector.load %arg18[%c0_78, %c0_79] : memref<32x32xf32, #tpu.memory_space<vmem>>, vector<32x32xf32>
      tpu.vector_store %arg18[%c0_78, %c0_79], %189 {strides = array<i32>} : memref<32x32xf32, #tpu.memory_space<vmem>>, vector<32x32xf32>,
    } else {
    }
    %c0 = arith.constant 0 : index
    %c0_1 = arith.constant 0 : index
    %3 = vector.load %arg18[%c0, %c0_1] : memref<32x32xf32, #tpu.memory_space<vmem>>, vector<32x32xf32>
    %c0_2 = arith.constant 0 : index
    %c0_3 = arith.constant 0 : index
    %c0_4 = arith.constant 0 : index
    %4 = vector.load %arg6[%c0_2, %c0_3, %c0_4] : memref<1x1x32xf32, #tpu.memory_space<vmem>>, vector<1x1x32xf32>
    %5 = vector.shape_cast %4 : vector<1x1x32xf32> to vector<1x32xf32>
    %c0_5 = arith.constant 0 : index
    %c0_6 = arith.constant 0 : index
    %c0_7 = arith.constant 0 : index
    %6 = vector.load %arg7[%c0_5, %c0_6, %c0_7] : memref<1x1x32xf32, #tpu.memory_space<vmem>>, vector<1x1x32xf32>
    %7 = vector.shape_cast %6 : vector<1x1x32xf32> to vector<1x32xf32>
    %cst = arith.constant dense<0.000000e+00> : vector<32xf32>
    %8 = vector.multi_reduction <add>, %3, %cst [1] : vector<32x32xf32> to vector<32xf32>
    %9 = vector.shape_cast %8 : vector<32xf32> to vector<32x1xf32>
    %cst_8 = arith.constant 3.200000e+01 : f32
    %10 = vector.broadcast %cst_8 : f32 to vector<32x1xf32>
    %11 = arith.divf %9, %10 : vector<32x1xf32>
    %12 = vector.broadcast %11 : vector<32x1xf32> to vector<32x32xf32>
    %13 = arith.subf %3, %12 : vector<32x32xf32>
    %14 = arith.mulf %13, %13 : vector<32x32xf32>
    %cst_9 = arith.constant dense<0.000000e+00> : vector<32xf32>
    %15 = vector.multi_reduction <add>, %14, %cst_9 [1] : vector<32x32xf32> to vector<32xf32>
    %16 = vector.shape_cast %15 : vector<32xf32> to vector<32x1xf32>
    %cst_10 = arith.constant 3.200000e+01 : f32
    %17 = vector.broadcast %cst_10 : f32 to vector<32x1xf32>
    %18 = arith.divf %16, %17 : vector<32x1xf32>
    %19 = vector.broadcast %11 : vector<32x1xf32> to vector<32x32xf32>
    %20 = arith.subf %3, %19 : vector<32x32xf32>
    %cst_11 = arith.constant 9.99999974E-6 : f32
    %21 = vector.broadcast %cst_11 : f32 to vector<32x1xf32>
    %22 = arith.addf %18, %21 : vector<32x1xf32>
    %23 = math.rsqrt %22 : vector<32x1xf32>
    %24 = vector.broadcast %23 : vector<32x1xf32> to vector<32x32xf32>
    %25 = arith.mulf %20, %24 : vector<32x32xf32>
    %26 = vector.broadcast %5 : vector<1x32xf32> to vector<32x32xf32>
    %27 = arith.mulf %25, %26 : vector<32x32xf32>
    %28 = vector.broadcast %7 : vector<1x32xf32> to vector<32x32xf32>
    %29 = arith.addf %27, %28 : vector<32x32xf32>
    %30 = arith.truncf %29 : vector<32x32xf32> to vector<32x32xbf16>
    %c0_12 = arith.constant 0 : index
    %c0_13 = arith.constant 0 : index
    %c0_14 = arith.constant 0 : index
    %31 = vector.load %arg8[%c0_12, %c0_13, %c0_14] : memref<1x32x96xbf16, #tpu.memory_space<vmem>>, vector<1x32x96xbf16>
    %32 = vector.shape_cast %31 : vector<1x32x96xbf16> to vector<32x96xbf16>
    %cst_15 = arith.constant dense<0.000000e+00> : vector<32x96xf32>
    %33 = tpu.matmul %30, %32, %cst_15 {dimension_numbers = #tpu.dot_dimension_numbers<[1], [0], [0], [1], [0, 0, 1, 1], [], []>} : vector<32x32xbf16>, vector<32x96xbf16>, vector<32x96xf32> -> vector<32x96xf32>
    %34 = arith.truncf %33 : vector<32x96xf32> to vector<32x96xbf16>
    %35 = vector.extract_strided_slice %34 {offsets = [0, 0], sizes = [16, 16], strides = [1, 1]} : vector<32x96xbf16> to vector<16x16xbf16>
    %36 = vector.shape_cast %35 : vector<16x16xbf16> to vector<1x16x16xbf16>
    %37 = vector.extract_strided_slice %34 {offsets = [0, 16], sizes = [16, 16], strides = [1, 1]} : vector<32x96xbf16> to vector<16x16xbf16>
    %38 = vector.shape_cast %37 : vector<16x16xbf16> to vector<1x16x16xbf16>
    %39 = vector.extract_strided_slice %34 {offsets = [16, 0], sizes = [16, 16], strides = [1, 1]} : vector<32x96xbf16> to vector<16x16xbf16>
    %40 = vector.shape_cast %39 : vector<16x16xbf16> to vector<1x16x16xbf16>
    %41 = vector.extract_strided_slice %34 {offsets = [16, 16], sizes = [16, 16], strides = [1, 1]} : vector<32x96xbf16> to vector<16x16xbf16>
    %42 = vector.shape_cast %41 : vector<16x16xbf16> to vector<1x16x16xbf16>
    %43 = tpu.concatenate %36, %38, %40, %42 in 0 : vector<1x16x16xbf16>, vector<1x16x16xbf16>, vector<1x16x16xbf16>, vector<1x16x16xbf16> -> vector<4x16x16xbf16>
    %44 = vector.extract_strided_slice %34 {offsets = [0, 32], sizes = [16, 16], strides = [1, 1]} : vector<32x96xbf16> to vector<16x16xbf16>
    %45 = vector.shape_cast %44 : vector<16x16xbf16> to vector<1x16x16xbf16>
    %46 = vector.extract_strided_slice %34 {offsets = [0, 48], sizes = [16, 16], strides = [1, 1]} : vector<32x96xbf16> to vector<16x16xbf16>
    %47 = vector.shape_cast %46 : vector<16x16xbf16> to vector<1x16x16xbf16>
    %48 = vector.extract_strided_slice %34 {offsets = [16, 32], sizes = [16, 16], strides = [1, 1]} : vector<32x96xbf16> to vector<16x16xbf16>
    %49 = vector.shape_cast %48 : vector<16x16xbf16> to vector<1x16x16xbf16>
    %50 = vector.extract_strided_slice %34 {offsets = [16, 48], sizes = [16, 16], strides = [1, 1]} : vector<32x96xbf16> to vector<16x16xbf16>
    %51 = vector.shape_cast %50 : vector<16x16xbf16> to vector<1x16x16xbf16>
    %52 = tpu.concatenate %45, %47, %49, %51 in 0 : vector<1x16x16xbf16>, vector<1x16x16xbf16>, vector<1x16x16xbf16>, vector<1x16x16xbf16> -> vector<4x16x16xbf16>
    %53 = vector.extract_strided_slice %34 {offsets = [0, 64], sizes = [16, 16], strides = [1, 1]} : vector<32x96xbf16> to vector<16x16xbf16>
    %54 = vector.shape_cast %53 : vector<16x16xbf16> to vector<1x16x16xbf16>
    %55 = vector.extract_strided_slice %34 {offsets = [0, 80], sizes = [16, 16], strides = [1, 1]} : vector<32x96xbf16> to vector<16x16xbf16>
    %56 = vector.shape_cast %55 : vector<16x16xbf16> to vector<1x16x16xbf16>
    %57 = vector.extract_strided_slice %34 {offsets = [16, 64], sizes = [16, 16], strides = [1, 1]} : vector<32x96xbf16> to vector<16x16xbf16>
    %58 = vector.shape_cast %57 : vector<16x16xbf16> to vector<1x16x16xbf16>
    %59 = vector.extract_strided_slice %34 {offsets = [16, 80], sizes = [16, 16], strides = [1, 1]} : vector<32x96xbf16> to vector<16x16xbf16>
    %60 = vector.shape_cast %59 : vector<16x16xbf16> to vector<1x16x16xbf16>
    %61 = tpu.concatenate %54, %56, %58, %60 in 0 : vector<1x16x16xbf16>, vector<1x16x16xbf16>, vector<1x16x16xbf16>, vector<1x16x16xbf16> -> vector<4x16x16xbf16>
    "tpu.trace_start"() <{level = 10 : i32, message = "gqd,gkd->gqk"}> : () -> ()
    %cst_16 = arith.constant dense<0.000000e+00> : vector<4x16x16xf32>
    %62 = tpu.matmul %43, %52, %cst_16 {dimension_numbers = #tpu.dot_dimension_numbers<[2], [2], [1], [1], [0, 0, 0, 1, 1, 1], [0], [0]>} : vector<4x16x16xbf16>, vector<4x16x16xbf16>, vector<4x16x16xf32> -> vector<4x16x16xf32>
    "tpu.trace_stop"() : () -> ()
    %cst_17 = arith.constant dense<0xFF800000> : vector<4x16xf32>
    %63 = vector.multi_reduction <maximumf>, %62, %cst_17 [2] : vector<4x16x16xf32> to vector<4x16xf32>
    %64 = vector.shape_cast %63 : vector<4x16xf32> to vector<4x16x1xf32>
    %65 = vector.broadcast %64 : vector<4x16x1xf32> to vector<4x16x16xf32>
    %66 = arith.subf %62, %65 : vector<4x16x16xf32>
    %67 = math.exp %66 : vector<4x16x16xf32>
    %cst_18 = arith.constant dense<0.000000e+00> : vector<4x16xf32>
    %68 = vector.multi_reduction <add>, %67, %cst_18 [2] : vector<4x16x16xf32> to vector<4x16xf32>
    %69 = vector.shape_cast %68 : vector<4x16xf32> to vector<4x16x1xf32>
    %70 = tpu.reciprocal %69 {approx = true} : vector<4x16x1xf32> -> vector<4x16x1xf32>
    %71 = vector.broadcast %70 : vector<4x16x1xf32> to vector<4x16x16xf32>
    %72 = arith.mulf %67, %71 : vector<4x16x16xf32>
    %73 = arith.truncf %72 : vector<4x16x16xf32> to vector<4x16x16xbf16>
    "tpu.trace_start"() <{level = 10 : i32, message = "gqk,gkd->gqd"}> : () -> ()
    %cst_19 = arith.constant dense<0.000000e+00> : vector<4x16x16xf32>
    %74 = tpu.matmul %73, %61, %cst_19 {dimension_numbers = #tpu.dot_dimension_numbers<[2], [1], [1], [2], [0, 0, 0, 1, 1, 2], [0], [0]>} : vector<4x16x16xbf16>, vector<4x16x16xbf16>, vector<4x16x16xf32> -> vector<4x16x16xf32>
    "tpu.trace_stop"() : () -> ()
    %75 = vector.extract_strided_slice %74 {offsets = [0, 0, 0], sizes = [1, 16, 16], strides = [1, 1, 1]} : vector<4x16x16xf32> to vector<1x16x16xf32>
    %76 = vector.shape_cast %75 : vector<1x16x16xf32> to vector<16x16xf32>
    %77 = vector.extract_strided_slice %74 {offsets = [1, 0, 0], sizes = [1, 16, 16], strides = [1, 1, 1]} : vector<4x16x16xf32> to vector<1x16x16xf32>
    %78 = vector.shape_cast %77 : vector<1x16x16xf32> to vector<16x16xf32>
    %79 = tpu.concatenate %76, %78 in 1 : vector<16x16xf32>, vector<16x16xf32> -> vector<16x32xf32>
    %80 = vector.extract_strided_slice %74 {offsets = [2, 0, 0], sizes = [1, 16, 16], strides = [1, 1, 1]} : vector<4x16x16xf32> to vector<1x16x16xf32>
    %81 = vector.shape_cast %80 : vector<1x16x16xf32> to vector<16x16xf32>
    %82 = vector.extract_strided_slice %74 {offsets = [3, 0, 0], sizes = [1, 16, 16], strides = [1, 1, 1]} : vector<4x16x16xf32> to vector<1x16x16xf32>
    %83 = vector.shape_cast %82 : vector<1x16x16xf32> to vector<16x16xf32>
    %84 = tpu.concatenate %81, %83 in 1 : vector<16x16xf32>, vector<16x16xf32> -> vector<16x32xf32>
    %85 = tpu.concatenate %79, %84 in 0 : vector<16x32xf32>, vector<16x32xf32> -> vector<32x32xf32>
    %86 = arith.truncf %85 : vector<32x32xf32> to vector<32x32xbf16>
    %c0_20 = arith.constant 0 : index
    %c0_21 = arith.constant 0 : index
    %c0_22 = arith.constant 0 : index
    %87 = vector.load %arg9[%c0_20, %c0_21, %c0_22] : memref<1x32x32xbf16, #tpu.memory_space<vmem>>, vector<1x32x32xbf16>
    %88 = vector.shape_cast %87 : vector<1x32x32xbf16> to vector<32x32xbf16>
    %cst_23 = arith.constant dense<0.000000e+00> : vector<32x32xf32>
    %89 = tpu.matmul %86, %88, %cst_23 {dimension_numbers = #tpu.dot_dimension_numbers<[1], [0], [0], [1], [0, 0, 1, 1], [], []>} : vector<32x32xbf16>, vector<32x32xbf16>, vector<32x32xf32> -> vector<32x32xf32>
    %90 = arith.addf %3, %89 : vector<32x32xf32>
    %c0_24 = arith.constant 0 : index
    %c0_25 = arith.constant 0 : index
    %c0_26 = arith.constant 0 : index
    %91 = vector.load %arg10[%c0_24, %c0_25, %c0_26] : memref<1x1x32xf32, #tpu.memory_space<vmem>>, vector<1x1x32xf32>
    %92 = vector.shape_cast %91 : vector<1x1x32xf32> to vector<1x32xf32>
    %93 = vector.broadcast %92 : vector<1x32xf32> to vector<32x32xf32>
    %94 = arith.addf %90, %93 : vector<32x32xf32>
    %c0_27 = arith.constant 0 : index
    %c0_28 = arith.constant 0 : index
    %c0_29 = arith.constant 0 : index
    %95 = vector.load %arg11[%c0_27, %c0_28, %c0_29] : memref<1x1x32xf32, #tpu.memory_space<vmem>>, vector<1x1x32xf32>
    %96 = vector.shape_cast %95 : vector<1x1x32xf32> to vector<1x32xf32>
    %c0_30 = arith.constant 0 : index
    %c0_31 = arith.constant 0 : index
    %c0_32 = arith.constant 0 : index
    %97 = vector.load %arg12[%c0_30, %c0_31, %c0_32] : memref<1x1x32xf32, #tpu.memory_space<vmem>>, vector<1x1x32xf32>
    %98 = vector.shape_cast %97 : vector<1x1x32xf32> to vector<1x32xf32>
    %cst_33 = arith.constant dense<0.000000e+00> : vector<32xf32>
    %99 = vector.multi_reduction <add>, %94, %cst_33 [1] : vector<32x32xf32> to vector<32xf32>
    %100 = vector.shape_cast %99 : vector<32xf32> to vector<32x1xf32>
    %cst_34 = arith.constant 3.200000e+01 : f32
    %101 = vector.broadcast %cst_34 : f32 to vector<32x1xf32>
    %102 = arith.divf %100, %101 : vector<32x1xf32>
    %103 = vector.broadcast %102 : vector<32x1xf32> to vector<32x32xf32>
    %104 = arith.subf %94, %103 : vector<32x32xf32>
    %105 = arith.mulf %104, %104 : vector<32x32xf32>
    %cst_35 = arith.constant dense<0.000000e+00> : vector<32xf32>
    %106 = vector.multi_reduction <add>, %105, %cst_35 [1] : vector<32x32xf32> to vector<32xf32>
    %107 = vector.shape_cast %106 : vector<32xf32> to vector<32x1xf32>
    %cst_36 = arith.constant 3.200000e+01 : f32
    %108 = vector.broadcast %cst_36 : f32 to vector<32x1xf32>
    %109 = arith.divf %107, %108 : vector<32x1xf32>
    %110 = vector.broadcast %102 : vector<32x1xf32> to vector<32x32xf32>
    %111 = arith.subf %94, %110 : vector<32x32xf32>
    %cst_37 = arith.constant 9.99999974E-6 : f32
    %112 = vector.broadcast %cst_37 : f32 to vector<32x1xf32>
    %113 = arith.addf %109, %112 : vector<32x1xf32>
    %114 = math.rsqrt %113 : vector<32x1xf32>
    %115 = vector.broadcast %114 : vector<32x1xf32> to vector<32x32xf32>
    %116 = arith.mulf %111, %115 : vector<32x32xf32>
    %117 = vector.broadcast %96 : vector<1x32xf32> to vector<32x32xf32>
    %118 = arith.mulf %116, %117 : vector<32x32xf32>
    %119 = vector.broadcast %98 : vector<1x32xf32> to vector<32x32xf32>
    %120 = arith.addf %118, %119 : vector<32x32xf32>
    %121 = arith.truncf %120 : vector<32x32xf32> to vector<32x32xbf16>
    %c0_38 = arith.constant 0 : index
    %c0_39 = arith.constant 0 : index
    %c0_40 = arith.constant 0 : index
    %122 = vector.load %arg13[%c0_38, %c0_39, %c0_40] : memref<1x32x64xbf16, #tpu.memory_space<vmem>>, vector<1x32x64xbf16>
    %123 = vector.shape_cast %122 : vector<1x32x64xbf16> to vector<32x64xbf16>
    %cst_41 = arith.constant dense<0.000000e+00> : vector<32x64xf32>
    %124 = tpu.matmul %121, %123, %cst_41 {dimension_numbers = #tpu.dot_dimension_numbers<[1], [0], [0], [1], [0, 0, 1, 1], [], []>} : vector<32x32xbf16>, vector<32x64xbf16>, vector<32x64xf32> -> vector<32x64xf32>
    %c0_42 = arith.constant 0 : index
    %c0_43 = arith.constant 0 : index
    %c0_44 = arith.constant 0 : index
    %125 = vector.load %arg14[%c0_42, %c0_43, %c0_44] : memref<1x1x64xf32, #tpu.memory_space<vmem>>, vector<1x1x64xf32>
    %126 = vector.shape_cast %125 : vector<1x1x64xf32> to vector<1x64xf32>
    %127 = vector.broadcast %126 : vector<1x64xf32> to vector<32x64xf32>
    %128 = arith.addf %124, %127 : vector<32x64xf32>
    %cst_45 = arith.constant 5.000000e-01 : f32
    %129 = vector.broadcast %cst_45 : f32 to vector<32x64xf32>
    %130 = arith.mulf %129, %128 : vector<32x64xf32>
    %cst_46 = arith.constant 0.707106769 : f32
    %131 = vector.broadcast %cst_46 : f32 to vector<32x64xf32>
    %132 = arith.mulf %128, %131 : vector<32x64xf32>
    %133 = math.absf %132 : vector<32x64xf32>
    %cst_47 = arith.constant 0.327591091 : f32
    %134 = vector.broadcast %cst_47 : f32 to vector<32x64xf32>
    %135 = arith.mulf %134, %133 : vector<32x64xf32>
    %cst_48 = arith.constant 1.000000e+00 : f32
    %136 = vector.broadcast %cst_48 : f32 to vector<32x64xf32>
    %137 = arith.addf %136, %135 : vector<32x64xf32>
    %138 = tpu.reciprocal %137 {approx = true} : vector<32x64xf32> -> vector<32x64xf32>
    %cst_49 = arith.constant 1.06140542 : f32
    %139 = vector.broadcast %cst_49 : f32 to vector<32x64xf32>
    %140 = arith.mulf %139, %138 : vector<32x64xf32>
    %cst_50 = arith.constant -1.45315206 : f32
    %141 = vector.broadcast %cst_50 : f32 to vector<32x64xf32>
    %142 = arith.addf %140, %141 : vector<32x64xf32>
    %143 = arith.mulf %142, %138 : vector<32x64xf32>
    %cst_51 = arith.constant 1.42141378 : f32
    %144 = vector.broadcast %cst_51 : f32 to vector<32x64xf32>
    %145 = arith.addf %143, %144 : vector<32x64xf32>
    %146 = arith.mulf %145, %138 : vector<32x64xf32>
    %cst_52 = arith.constant -0.284496725 : f32
    %147 = vector.broadcast %cst_52 : f32 to vector<32x64xf32>
    %148 = arith.addf %146, %147 : vector<32x64xf32>
    %149 = arith.mulf %148, %138 : vector<32x64xf32>
    %cst_53 = arith.constant 0.254829586 : f32
    %150 = vector.broadcast %cst_53 : f32 to vector<32x64xf32>
    %151 = arith.addf %149, %150 : vector<32x64xf32>
    %152 = arith.mulf %151, %138 : vector<32x64xf32>
    %cst_54 = arith.constant 0.000000e+00 : f32
    %153 = vector.broadcast %cst_54 : f32 to vector<32x64xf32>
    %154 = arith.subf %153, %133 : vector<32x64xf32>
    %155 = arith.mulf %154, %133 : vector<32x64xf32>
    %156 = math.exp %155 : vector<32x64xf32>
    %157 = arith.mulf %152, %156 : vector<32x64xf32>
    %cst_55 = arith.constant 1.000000e+00 : f32
    %158 = vector.broadcast %cst_55 : f32 to vector<32x64xf32>
    %159 = arith.subf %158, %157 : vector<32x64xf32>
    %cst_56 = arith.constant 0.000000e+00 : f32
    %160 = vector.broadcast %cst_56 : f32 to vector<32x64xf32>
    %161 = arith.cmpf oge, %132, %160 : vector<32x64xf32>
    %cst_57 = arith.constant 0.000000e+00 : f32
    %162 = vector.broadcast %cst_57 : f32 to vector<32x64xf32>
    %163 = arith.subf %162, %159 : vector<32x64xf32>
    %164 = arith.select %161, %159, %163 : vector<32x64xi1>, vector<32x64xf32>
    %cst_58 = arith.constant 1.000000e+00 : f32
    %165 = vector.broadcast %cst_58 : f32 to vector<32x64xf32>
    %166 = arith.addf %165, %164 : vector<32x64xf32>
    %167 = arith.mulf %130, %166 : vector<32x64xf32>
    %168 = arith.truncf %167 : vector<32x64xf32> to vector<32x64xbf16>
    %c0_59 = arith.constant 0 : index
    %c0_60 = arith.constant 0 : index
    %c0_61 = arith.constant 0 : index
    %169 = vector.load %arg15[%c0_59, %c0_60, %c0_61] : memref<1x64x32xbf16, #tpu.memory_space<vmem>>, vector<1x64x32xbf16>
    %170 = vector.shape_cast %169 : vector<1x64x32xbf16> to vector<64x32xbf16>
    %cst_62 = arith.constant dense<0.000000e+00> : vector<32x32xf32>
    %171 = tpu.matmul %168, %170, %cst_62 {dimension_numbers = #tpu.dot_dimension_numbers<[1], [0], [0], [1], [0, 0, 1, 1], [], []>} : vector<32x64xbf16>, vector<64x32xbf16>, vector<32x32xf32> -> vector<32x32xf32>
    %c0_63 = arith.constant 0 : index
    %c0_64 = arith.constant 0 : index
    %c0_65 = arith.constant 0 : index
    %172 = vector.load %arg16[%c0_63, %c0_64, %c0_65] : memref<1x1x32xf32, #tpu.memory_space<vmem>>, vector<1x1x32xf32>
    %173 = vector.shape_cast %172 : vector<1x1x32xf32> to vector<1x32xf32>
    %174 = vector.broadcast %173 : vector<1x32xf32> to vector<32x32xf32>
    %175 = arith.addf %171, %174 : vector<32x32xf32>
    %176 = arith.addf %94, %175 : vector<32x32xf32>
    %c0_66 = arith.constant 0 : index
    %c0_67 = arith.constant 0 : index
    %177 = vector.load %arg18[%c0_66, %c0_67] : memref<32x32xf32, #tpu.memory_space<vmem>>, vector<32x32xf32>
    tpu.vector_store %arg18[%c0_66, %c0_67], %176 {strides = array<i32>} : memref<32x32xf32, #tpu.memory_space<vmem>>, vector<32x32xf32>,
    %c1_i32 = arith.constant 1 : i32
    %178 = arith.cmpi eq, %arg1, %c1_i32 : i32
    %179 = arith.extui %178 : i1 to i32
    %c0_i32_68 = arith.constant 0 : i32
    %180 = arith.cmpi ne, %179, %c0_i32_68 : i32
    scf.if %180 {
      %181 = arith.truncf %176 : vector<32x32xf32> to vector<32x32xbf16>
      %c0_69 = arith.constant 0 : index
      %c0_70 = arith.constant 0 : index
      %182 = vector.load %arg17[%c0_69, %c0_70] : memref<32x32xbf16, #tpu.memory_space<vmem>>, vector<32x32xbf16>
      tpu.vector_store %arg17[%c0_69, %c0_70], %181 {strides = array<i32>} : memref<32x32xbf16, #tpu.memory_space<vmem>>, vector<32x32xbf16>,
    } else {
    }
    return
  }
  func.func @transform_0(%arg0: i32, %arg1: i32) -> (i32, i32) {
    %c0_i32 = arith.constant 0 : i32
    %c0_i32_0 = arith.constant 0 : i32
    return %arg0, %c0_i32 : i32, i32
  }
  func.func @transform_1(%arg0: i32, %arg1: i32) -> (i32, i32) {
    %c0_i32 = arith.constant 0 : i32
    %c0_i32_0 = arith.constant 0 : i32
    %c0_i32_1 = arith.constant 0 : i32
    return %c0_i32, %c0_i32_0 : i32, i32
  }
  func.func @transform_2(%arg0: i32, %arg1: i32) -> (i32, i32) {
    %c0_i32 = arith.constant 0 : i32
    %c0_i32_0 = arith.constant 0 : i32
    %c0_i32_1 = arith.constant 0 : i32
    return %c0_i32, %c0_i32_0 : i32, i32
  }
  func.func @transform_3(%arg0: i32, %arg1: i32) -> (i32, i32) {
    %c0_i32 = arith.constant 0 : i32
    %c0_i32_0 = arith.constant 0 : i32
    %c0_i32_1 = arith.constant 0 : i32
    return %c0_i32, %c0_i32_0 : i32, i32
  }
  func.func @transform_4(%arg0: i32, %arg1: i32) -> (i32, i32, i32) {
    %c0_i32 = arith.constant 0 : i32
    %c0_i32_0 = arith.constant 0 : i32
    %c0_i32_1 = arith.constant 0 : i32
    return %arg1, %c0_i32, %c0_i32_0 : i32, i32, i32
  }
  func.func @transform_5(%arg0: i32, %arg1: i32) -> (i32, i32, i32) {
    %c0_i32 = arith.constant 0 : i32
    %c0_i32_0 = arith.constant 0 : i32
    %c0_i32_1 = arith.constant 0 : i32
    return %arg1, %c0_i32, %c0_i32_0 : i32, i32, i32
  }
  func.func @transform_6(%arg0: i32, %arg1: i32) -> (i32, i32, i32) {
    %c0_i32 = arith.constant 0 : i32
    %c0_i32_0 = arith.constant 0 : i32
    %c0_i32_1 = arith.constant 0 : i32
    return %arg1, %c0_i32, %c0_i32_0 : i32, i32, i32
  }
  func.func @transform_7(%arg0: i32, %arg1: i32) -> (i32, i32, i32) {
    %c0_i32 = arith.constant 0 : i32
    %c0_i32_0 = arith.constant 0 : i32
    %c0_i32_1 = arith.constant 0 : i32
    return %arg1, %c0_i32, %c0_i32_0 : i32, i32, i32
  }
  func.func @transform_8(%arg0: i32, %arg1: i32) -> (i32, i32, i32) {
    %c0_i32 = arith.constant 0 : i32
    %c0_i32_0 = arith.constant 0 : i32
    %c0_i32_1 = arith.constant 0 : i32
    return %arg1, %c0_i32, %c0_i32_0 : i32, i32, i32
  }
  func.func @transform_9(%arg0: i32, %arg1: i32) -> (i32, i32, i32) {
    %c0_i32 = arith.constant 0 : i32
    %c0_i32_0 = arith.constant 0 : i32
    %c0_i32_1 = arith.constant 0 : i32
    return %arg1, %c0_i32, %c0_i32_0 : i32, i32, i32
  }
  func.func @transform_10(%arg0: i32, %arg1: i32) -> (i32, i32, i32) {
    %c0_i32 = arith.constant 0 : i32
    %c0_i32_0 = arith.constant 0 : i32
    %c0_i32_1 = arith.constant 0 : i32
    return %arg1, %c0_i32, %c0_i32_0 : i32, i32, i32
  }
  func.func @transform_11(%arg0: i32, %arg1: i32) -> (i32, i32, i32) {
    %c0_i32 = arith.constant 0 : i32
    %c0_i32_0 = arith.constant 0 : i32
    %c0_i32_1 = arith.constant 0 : i32
    return %arg1, %c0_i32, %c0_i32_0 : i32, i32, i32
  }
  func.func @transform_12(%arg0: i32, %arg1: i32) -> (i32, i32, i32) {
    %c0_i32 = arith.constant 0 : i32
    %c0_i32_0 = arith.constant 0 : i32
    %c0_i32_1 = arith.constant 0 : i32
    return %arg1, %c0_i32, %c0_i32_0 : i32, i32, i32
  }
  func.func @transform_13(%arg0: i32, %arg1: i32) -> (i32, i32, i32) {
    %c0_i32 = arith.constant 0 : i32
    %c0_i32_0 = arith.constant 0 : i32
    %c0_i32_1 = arith.constant 0 : i32
    return %arg1, %c0_i32, %c0_i32_0 : i32, i32, i32
  }
  func.func @transform_14(%arg0: i32, %arg1: i32) -> (i32, i32, i32) {
    %c0_i32 = arith.constant 0 : i32
    %c0_i32_0 = arith.constant 0 : i32
    %c0_i32_1 = arith.constant 0 : i32
    return %arg1, %c0_i32, %c0_i32_0 : i32, i32, i32
  }
  func.func @transform_15(%arg0: i32, %arg1: i32) -> (i32, i32) {
    %c0_i32 = arith.constant 0 : i32
    %c0_i32_0 = arith.constant 0 : i32
    return %arg0, %c0_i32 : i32, i32
  }
}

</mosaic_0001>

<llo_original>
// kernel: tpu_custom_call.1
$region0: #{tpu_custom_call.1}
  #allocation0 [shape = 'u32[]', space=smem, size = 0x4, offset = 0x4, fixed_abs, tag = 'smem constant byte address 0x4 - core index']
  #allocation1 [shape = 'u32[72,128]{1,0:T(1,128)}', space=vmem, size = 0x9000, scoped, tag = 'internal scratch']
  #allocation2 [shape = 'f32[32,32]{1,0:T(8,128)}', space=vmem, size = 0x4000, scoped, tag = 'scratch operand']
  %s0 = inlined_call_operand.vmem [shape: f32[32,48], index: 0, kind: input, shape index: {}]
  %s1 = inlined_call_operand.vmem [shape: bf16[48,32], index: 1, kind: input, shape index: {}]
  %s2 = inlined_call_operand.vmem [shape: f32[1,32], index: 2, kind: input, shape index: {}]
  %s3 = inlined_call_operand.vmem [shape: f32[32,32], index: 3, kind: input, shape index: {}]
  %s4 = inlined_call_operand.vmem [shape: f32[2,1,32], index: 4, kind: input, shape index: {}]
  %s5 = inlined_call_operand.vmem [shape: f32[2,1,32], index: 5, kind: input, shape index: {}]
  %s6 = inlined_call_operand.vmem [shape: bf16[2,32,96], index: 6, kind: input, shape index: {}]
  %s7 = inlined_call_operand.hbm [shape: bf16[2,32,32], index: 7, kind: input, shape index: {}]
  %s8 = inlined_call_operand.vmem [shape: f32[2,1,32], index: 8, kind: input, shape index: {}]
  %s9 = inlined_call_operand.vmem [shape: f32[2,1,32], index: 9, kind: input, shape index: {}]
  %s10 = inlined_call_operand.vmem [shape: f32[2,1,32], index: 10, kind: input, shape index: {}]
  %s11 = inlined_call_operand.hbm [shape: bf16[2,32,64], index: 11, kind: input, shape index: {}]
  %s12 = inlined_call_operand.vmem [shape: f32[2,1,64], index: 12, kind: input, shape index: {}]
  %s13 = inlined_call_operand.vmem [shape: bf16[2,64,32], index: 13, kind: input, shape index: {}]
  %s14 = inlined_call_operand.vmem [shape: f32[2,1,32], index: 14, kind: input, shape index: {}]
  %s15 = inlined_call_operand.hbm [shape: bf16[32,32], index: 15, kind: output, shape index: {}]
  %s16 = sld [smem:[#allocation0]]
  $region109: #{tpu_custom_call.1} parent=0
    _
  %s18 = ssub.s32 1, %s16
  %s19 = scalar_select 0, %s18, %s16
  $region1: #{tpu_custom_call.1} parent=0
    #allocation3 [shape = 'u8[16384]{0}', space=vmem, size = 0x4000, scoped, tag = 'input window, operand 7']
    #allocation4 [shape = 's32[2]{0}', space=sflag, size = 0x8, scoped, tag = 'scoped memory for tpu_custom_call.1']
    #allocation5 [shape = 's32[2]{0}', space=sflag, size = 0x8, scoped, tag = 'scoped memory for tpu_custom_call.1']
    #allocation6 [shape = 'u8[16384]{0}', space=vmem, size = 0x4000, scoped, tag = 'input window, operand 11']
    #allocation7 [shape = 's32[2]{0}', space=sflag, size = 0x8, scoped, tag = 'scoped memory for tpu_custom_call.1']
    #allocation8 [shape = 'u8[8192]{0}', space=vmem, size = 0x2000, scoped, tag = 'output window, operand 0, single buffered']
    %20 = vsyncpa [#allocation4], 0
    %s21 = scalar_lea.sflag [#allocation4], 1
    %22 = vsyncpa %s21, 0
    %23 = vsyncpa [#allocation7], 0
    %s24 = scalar_lea.sflag [#allocation7], 1
    %25 = vsyncpa %s24, 0
    %26 = vsyncpa [#allocation5], 0
    loop: start=0, step=1, limit=4
    $region2: #{tpu_custom_call.1} parent=1 // loop_pre_header
      _
    $region3: #{tpu_custom_call.1} parent=1 // loop_header
      %s28 = sphi 0, %s32
      %p29 = scmp.ge.s32.totalorder %s28, 4
      %s35 = sphi 0, %s47
      %s36 = sphi 0, %s43
      %s37 = sphi 0, %s35
      %s38 = sphi 0, %s36
      %s39 = sphi 0, %s37
      %s40 = sphi 0, %s38
      %s50 = sphi 0, %s52
      %s53 = sphi 0, %s50
      %s54 = sphi 0, %s53
      %s70 = sphi 0, %s54
      %s74 = sphi 0, %s74
      %s76 = sphi 0, %s74
      %s77 = sphi 0, %s76
      %s91 = sphi 0, %s77
      %s95 = sphi 0, %s95
      %s97 = sphi 0, %s95
      %s98 = sphi 0, %s97
      %s112 = sphi 0, %s98
      %s116 = sphi 0, %s116
      %s118 = sphi 0, %s116
      %s119 = sphi 0, %s118
      %s133 = sphi 0, %s119
      %s139 = sphi 0, %s141
      %s142 = sphi 0, %s139
      %s143 = sphi 0, %s142
      %s159 = sphi 0, %s143
      %s165 = sphi 0, %s167
      %s168 = sphi 0, %s165
      %s169 = sphi 0, %s168
      %s185 = sphi 0, %s169
      %s191 = sphi 0, %s193
      %s194 = sphi 0, %s191
      %s195 = sphi 0, %s194
      %s211 = sphi 0, %s195
      %s217 = sphi 0, %s219
      %s220 = sphi 0, %s217
      %s221 = sphi 0, %s220
      %s237 = sphi 0, %s221
      %s243 = sphi 0, %s245
      %s246 = sphi 0, %s243
      %s247 = sphi 0, %s246
      %s263 = sphi 0, %s247
      %s269 = sphi 0, %s271
      %s272 = sphi 0, %s269
      %s273 = sphi 0, %s272
      %s289 = sphi 0, %s273
      %s295 = sphi 0, %s297
      %s298 = sphi 0, %s295
      %s299 = sphi 0, %s298
      %s315 = sphi 0, %s299
      %s321 = sphi 0, %s323
      %s324 = sphi 0, %s321
      %s325 = sphi 0, %s324
      %s341 = sphi 0, %s325
      %s347 = sphi 0, %s349
      %s350 = sphi 0, %s347
      %s351 = sphi 0, %s350
      %s367 = sphi 0, %s351
      %s373 = sphi 0, %s375
      %s376 = sphi 0, %s373
      %s377 = sphi 0, %s376
      %s393 = sphi 0, %s377
      %s399 = sphi 0, %s401
      %s402 = sphi 0, %s399
      %s403 = sphi 0, %s402
      %s419 = sphi 0, %s403
      %s425 = sphi 0, %s427
      %s428 = sphi 0, %s425
      %s429 = sphi 0, %s428
      %s445 = sphi 0, %s429
    $region4: #{tpu_custom_call.1} parent=1 // loop_header_branch
      %31 = sbr.rel (%p29) target = $region8
    $region5: #{tpu_custom_call.1} parent=1 // loop_body
      %s33 = ssub.s32 %s28, 1
      %s34 = ssub.s32 %s28, 2
      %s41 = sadd.s32 1, %s36
      %p42 = scmp.ge.s32.totalorder %s41, 2
      %s43 = scalar_select %p42, 0, %s41
      %s44 = sadd.s32 1, %s35
      %s45 = scalar_select %p42, %s44, %s35
      %p46 = scmp.ge.s32.totalorder %s45, 1
      %s47 = scalar_select %p46, 0, %s45
      %s48 = ssub.s32 %s35, %s47
      %p49 = scmp.eq.s32.totalorder %s48, 0
      %s51 = sadd.s32 %s50, 1
      %s52 = scalar_select %p49, %s50, %s51
      %p55 = pneg %p49
      %p56 = scmp.eq.s32.totalorder %s28, 1
      %p57 = por %p55, %p56
      %p58 = scmp.ne.s32.totalorder %s50, %s53
      %p59 = scmp.eq.s32.totalorder %s28, 0
      %p60 = por %p58, %p59
      %p61 = scmp.ne.s32.totalorder %s50, %s53
      %p62 = scmp.eq.s32.totalorder %s33, 1
      %p63 = por %p61, %p62
      %p64 = scmp.ne.s32.totalorder %s53, %s54
      %p65 = scmp.eq.s32.totalorder %s33, 0
      %p66 = por %p64, %p65
      %p67 = scmp.ne.s32.totalorder %s53, %s54
      %p68 = scmp.eq.s32.totalorder %s34, 1
      %p69 = por %p67, %p68
      %p71 = scmp.ne.s32.totalorder %s54, %s70
      %p72 = scmp.eq.s32.totalorder %s34, 0
      %p73 = por %p71, %p72
      %s75 = sadd.s32 %s74, 1
      %p78 = scmp.eq.s32.totalorder %s28, 1
      %p79 = scmp.ne.s32.totalorder %s74, %s76
      %p80 = scmp.eq.s32.totalorder %s28, 0
      %p81 = por %p79, %p80
      %p82 = scmp.ne.s32.totalorder %s74, %s76
      %p83 = scmp.eq.s32.totalorder %s33, 1
      %p84 = por %p82, %p83
      %p85 = scmp.ne.s32.totalorder %s76, %s77
      %p86 = scmp.eq.s32.totalorder %s33, 0
      %p87 = por %p85, %p86
      %p88 = scmp.ne.s32.totalorder %s76, %s77
      %p89 = scmp.eq.s32.totalorder %s34, 1
      %p90 = por %p88, %p89
      %p92 = scmp.ne.s32.totalorder %s77, %s91
      %p93 = scmp.eq.s32.totalorder %s34, 0
      %p94 = por %p92, %p93
      %s96 = sadd.s32 %s95, 1
      %p99 = scmp.eq.s32.totalorder %s28, 1
      %p100 = scmp.ne.s32.totalorder %s95, %s97
      %p101 = scmp.eq.s32.totalorder %s28, 0
      %p102 = por %p100, %p101
      %p103 = scmp.ne.s32.totalorder %s95, %s97
      %p104 = scmp.eq.s32.totalorder %s33, 1
      %p105 = por %p103, %p104
      %p106 = scmp.ne.s32.totalorder %s97, %s98
      %p107 = scmp.eq.s32.totalorder %s33, 0
      %p108 = por %p106, %p107
      %p109 = scmp.ne.s32.totalorder %s97, %s98
      %p110 = scmp.eq.s32.totalorder %s34, 1
      %p111 = por %p109, %p110
      %p113 = scmp.ne.s32.totalorder %s98, %s112
      %p114 = scmp.eq.s32.totalorder %s34, 0
      %p115 = por %p113, %p114
      %s117 = sadd.s32 %s116, 1
      %p120 = scmp.eq.s32.totalorder %s28, 1
      %p121 = scmp.ne.s32.totalorder %s116, %s118
      %p122 = scmp.eq.s32.totalorder %s28, 0
      %p123 = por %p121, %p122
      %p124 = scmp.ne.s32.totalorder %s116, %s118
      %p125 = scmp.eq.s32.totalorder %s33, 1
      %p126 = por %p124, %p125
      %p127 = scmp.ne.s32.totalorder %s118, %s119
      %p128 = scmp.eq.s32.totalorder %s33, 0
      %p129 = por %p127, %p128
      %p130 = scmp.ne.s32.totalorder %s118, %s119
      %p131 = scmp.eq.s32.totalorder %s34, 1
      %p132 = por %p130, %p131
      %p134 = scmp.ne.s32.totalorder %s119, %s133
      %p135 = scmp.eq.s32.totalorder %s34, 0
      %p136 = por %p134, %p135
      %s137 = ssub.s32 %s36, %s43
      %p138 = scmp.eq.s32.totalorder %s137, 0
      %s140 = sadd.s32 %s139, 1
      %s141 = scalar_select %p138, %s139, %s140
      %p144 = pneg %p138
      %p145 = scmp.eq.s32.totalorder %s28, 1
      %p146 = por %p144, %p145
      %p147 = scmp.ne.s32.totalorder %s139, %s142
      %p148 = scmp.eq.s32.totalorder %s28, 0
      %p149 = por %p147, %p148
      %p150 = scmp.ne.s32.totalorder %s139, %s142
      %p151 = scmp.eq.s32.totalorder %s33, 1
      %p152 = por %p150, %p151
      %p153 = scmp.ne.s32.totalorder %s142, %s143
      %p154 = scmp.eq.s32.totalorder %s33, 0
      %p155 = por %p153, %p154
      %p156 = scmp.ne.s32.totalorder %s142, %s143
      %p157 = scmp.eq.s32.totalorder %s34, 1
      %p158 = por %p156, %p157
      %p160 = scmp.ne.s32.totalorder %s143, %s159
      %p161 = scmp.eq.s32.totalorder %s34, 0
      %p162 = por %p160, %p161
      %s163 = ssub.s32 %s36, %s43
      %p164 = scmp.eq.s32.totalorder %s163, 0
      %s166 = sadd.s32 %s165, 1
      %s167 = scalar_select %p164, %s165, %s166
      %p170 = pneg %p164
      %p171 = scmp.eq.s32.totalorder %s28, 1
      %p172 = por %p170, %p171
      %p173 = scmp.ne.s32.totalorder %s165, %s168
      %p174 = scmp.eq.s32.totalorder %s28, 0
      %p175 = por %p173, %p174
      %p176 = scmp.ne.s32.totalorder %s165, %s168
      %p177 = scmp.eq.s32.totalorder %s33, 1
      %p178 = por %p176, %p177
      %p179 = scmp.ne.s32.totalorder %s168, %s169
      %p180 = scmp.eq.s32.totalorder %s33, 0
      %p181 = por %p179, %p180
      %p182 = scmp.ne.s32.totalorder %s168, %s169
      %p183 = scmp.eq.s32.totalorder %s34, 1
      %p184 = por %p182, %p183
      %p186 = scmp.ne.s32.totalorder %s169, %s185
      %p187 = scmp.eq.s32.totalorder %s34, 0
      %p188 = por %p186, %p187
      %s189 = ssub.s32 %s36, %s43
      %p190 = scmp.eq.s32.totalorder %s189, 0
      %s192 = sadd.s32 %s191, 1
      %s193 = scalar_select %p190, %s191, %s192
      %p196 = pneg %p190
      %p197 = scmp.eq.s32.totalorder %s28, 1
      %p198 = por %p196, %p197
      %p199 = scmp.ne.s32.totalorder %s191, %s194
      %p200 = scmp.eq.s32.totalorder %s28, 0
      %p201 = por %p199, %p200
      %p202 = scmp.ne.s32.totalorder %s191, %s194
      %p203 = scmp.eq.s32.totalorder %s33, 1
      %p204 = por %p202, %p203
      %p205 = scmp.ne.s32.totalorder %s194, %s195
      %p206 = scmp.eq.s32.totalorder %s33, 0
      %p207 = por %p205, %p206
      %p208 = scmp.ne.s32.totalorder %s194, %s195
      %p209 = scmp.eq.s32.totalorder %s34, 1
      %p210 = por %p208, %p209
      %p212 = scmp.ne.s32.totalorder %s195, %s211
      %p213 = scmp.eq.s32.totalorder %s34, 0
      %p214 = por %p212, %p213
      %s215 = ssub.s32 %s36, %s43
      %p216 = scmp.eq.s32.totalorder %s215, 0
      %s218 = sadd.s32 %s217, 1
      %s219 = scalar_select %p216, %s217, %s218
      %p222 = pneg %p216
      %p223 = scmp.eq.s32.totalorder %s28, 1
      %p224 = por %p222, %p223
      %p225 = scmp.ne.s32.totalorder %s217, %s220
      %p226 = scmp.eq.s32.totalorder %s28, 0
      %p227 = por %p225, %p226
      %p228 = scmp.ne.s32.totalorder %s217, %s220
      %p229 = scmp.eq.s32.totalorder %s33, 1
      %p230 = por %p228, %p229
      %p231 = scmp.ne.s32.totalorder %s220, %s221
      %p232 = scmp.eq.s32.totalorder %s33, 0
      %p233 = por %p231, %p232
      %p234 = scmp.ne.s32.totalorder %s220, %s221
      %p235 = scmp.eq.s32.totalorder %s34, 1
      %p236 = por %p234, %p235
      %p238 = scmp.ne.s32.totalorder %s221, %s237
      %p239 = scmp.eq.s32.totalorder %s34, 0
      %p240 = por %p238, %p239
      %s241 = ssub.s32 %s36, %s43
      %p242 = scmp.eq.s32.totalorder %s241, 0
      %s244 = sadd.s32 %s243, 1
      %s245 = scalar_select %p242, %s243, %s244
      %p248 = pneg %p242
      %p249 = scmp.eq.s32.totalorder %s28, 1
      %p250 = por %p248, %p249
      %p251 = scmp.ne.s32.totalorder %s243, %s246
      %p252 = scmp.eq.s32.totalorder %s28, 0
      %p253 = por %p251, %p252
      %p254 = scmp.ne.s32.totalorder %s243, %s246
      %p255 = scmp.eq.s32.totalorder %s33, 1
      %p256 = por %p254, %p255
      %p257 = scmp.ne.s32.totalorder %s246, %s247
      %p258 = scmp.eq.s32.totalorder %s33, 0
      %p259 = por %p257, %p258
      %p260 = scmp.ne.s32.totalorder %s246, %s247
      %p261 = scmp.eq.s32.totalorder %s34, 1
      %p262 = por %p260, %p261
      %p264 = scmp.ne.s32.totalorder %s247, %s263
      %p265 = scmp.eq.s32.totalorder %s34, 0
      %p266 = por %p264, %p265
      %s267 = ssub.s32 %s36, %s43
      %p268 = scmp.eq.s32.totalorder %s267, 0
      %s270 = sadd.s32 %s269, 1
      %s271 = scalar_select %p268, %s269, %s270
      %p274 = pneg %p268
      %p275 = scmp.eq.s32.totalorder %s28, 1
      %p276 = por %p274, %p275
      %p277 = scmp.ne.s32.totalorder %s269, %s272
      %p278 = scmp.eq.s32.totalorder %s28, 0
      %p279 = por %p277, %p278
      %p280 = scmp.ne.s32.totalorder %s269, %s272
      %p281 = scmp.eq.s32.totalorder %s33, 1
      %p282 = por %p280, %p281
      %p283 = scmp.ne.s32.totalorder %s272, %s273
      %p284 = scmp.eq.s32.totalorder %s33, 0
      %p285 = por %p283, %p284
      %p286 = scmp.ne.s32.totalorder %s272, %s273
      %p287 = scmp.eq.s32.totalorder %s34, 1
      %p288 = por %p286, %p287
      %p290 = scmp.ne.s32.totalorder %s273, %s289
      %p291 = scmp.eq.s32.totalorder %s34, 0
      %p292 = por %p290, %p291
      %s293 = ssub.s32 %s36, %s43
      %p294 = scmp.eq.s32.totalorder %s293, 0
      %s296 = sadd.s32 %s295, 1
      %s297 = scalar_select %p294, %s295, %s296
      %p300 = pneg %p294
      %p301 = scmp.eq.s32.totalorder %s28, 1
      %p302 = por %p300, %p301
      %p303 = scmp.ne.s32.totalorder %s295, %s298
      %p304 = scmp.eq.s32.totalorder %s28, 0
      %p305 = por %p303, %p304
      %p306 = scmp.ne.s32.totalorder %s295, %s298
      %p307 = scmp.eq.s32.totalorder %s33, 1
      %p308 = por %p306, %p307
      %p309 = scmp.ne.s32.totalorder %s298, %s299
      %p310 = scmp.eq.s32.totalorder %s33, 0
      %p311 = por %p309, %p310
      %p312 = scmp.ne.s32.totalorder %s298, %s299
      %p313 = scmp.eq.s32.totalorder %s34, 1
      %p314 = por %p312, %p313
      %p316 = scmp.ne.s32.totalorder %s299, %s315
      %p317 = scmp.eq.s32.totalorder %s34, 0
      %p318 = por %p316, %p317
      %s319 = ssub.s32 %s36, %s43
      %p320 = scmp.eq.s32.totalorder %s319, 0
      %s322 = sadd.s32 %s321, 1
      %s323 = scalar_select %p320, %s321, %s322
      %p326 = pneg %p320
      %p327 = scmp.eq.s32.totalorder %s28, 1
      %p328 = por %p326, %p327
      %p329 = scmp.ne.s32.totalorder %s321, %s324
      %p330 = scmp.eq.s32.totalorder %s28, 0
      %p331 = por %p329, %p330
      %p332 = scmp.ne.s32.totalorder %s321, %s324
      %p333 = scmp.eq.s32.totalorder %s33, 1
      %p334 = por %p332, %p333
      %p335 = scmp.ne.s32.totalorder %s324, %s325
      %p336 = scmp.eq.s32.totalorder %s33, 0
      %p337 = por %p335, %p336
      %p338 = scmp.ne.s32.totalorder %s324, %s325
      %p339 = scmp.eq.s32.totalorder %s34, 1
      %p340 = por %p338, %p339
      %p342 = scmp.ne.s32.totalorder %s325, %s341
      %p343 = scmp.eq.s32.totalorder %s34, 0
      %p344 = por %p342, %p343
      %s345 = ssub.s32 %s36, %s43
      %p346 = scmp.eq.s32.totalorder %s345, 0
      %s348 = sadd.s32 %s347, 1
      %s349 = scalar_select %p346, %s347, %s348
      %p352 = pneg %p346
      %p353 = scmp.eq.s32.totalorder %s28, 1
      %p354 = por %p352, %p353
      %p355 = scmp.ne.s32.totalorder %s347, %s350
      %p356 = scmp.eq.s32.totalorder %s28, 0
      %p357 = por %p355, %p356
      %p358 = scmp.ne.s32.totalorder %s347, %s350
      %p359 = scmp.eq.s32.totalorder %s33, 1
      %p360 = por %p358, %p359
      %p361 = scmp.ne.s32.totalorder %s350, %s351
      %p362 = scmp.eq.s32.totalorder %s33, 0
      %p363 = por %p361, %p362
      %p364 = scmp.ne.s32.totalorder %s350, %s351
      %p365 = scmp.eq.s32.totalorder %s34, 1
      %p366 = por %p364, %p365
      %p368 = scmp.ne.s32.totalorder %s351, %s367
      %p369 = scmp.eq.s32.totalorder %s34, 0
      %p370 = por %p368, %p369
      %s371 = ssub.s32 %s36, %s43
      %p372 = scmp.eq.s32.totalorder %s371, 0
      %s374 = sadd.s32 %s373, 1
      %s375 = scalar_select %p372, %s373, %s374
      %p378 = pneg %p372
      %p379 = scmp.eq.s32.totalorder %s28, 1
      %p380 = por %p378, %p379
      %p381 = scmp.ne.s32.totalorder %s373, %s376
      %p382 = scmp.eq.s32.totalorder %s28, 0
      %p383 = por %p381, %p382
      %p384 = scmp.ne.s32.totalorder %s373, %s376
      %p385 = scmp.eq.s32.totalorder %s33, 1
      %p386 = por %p384, %p385
      %p387 = scmp.ne.s32.totalorder %s376, %s377
      %p388 = scmp.eq.s32.totalorder %s33, 0
      %p389 = por %p387, %p388
      %p390 = scmp.ne.s32.totalorder %s376, %s377
      %p391 = scmp.eq.s32.totalorder %s34, 1
      %p392 = por %p390, %p391
      %p394 = scmp.ne.s32.totalorder %s377, %s393
      %p395 = scmp.eq.s32.totalorder %s34, 0
      %p396 = por %p394, %p395
      %s397 = ssub.s32 %s36, %s43
      %p398 = scmp.eq.s32.totalorder %s397, 0
      %s400 = sadd.s32 %s399, 1
      %s401 = scalar_select %p398, %s399, %s400
      %p404 = pneg %p398
      %p405 = scmp.eq.s32.totalorder %s28, 1
      %p406 = por %p404, %p405
      %p407 = scmp.ne.s32.totalorder %s399, %s402
      %p408 = scmp.eq.s32.totalorder %s28, 0
      %p409 = por %p407, %p408
      %p410 = scmp.ne.s32.totalorder %s399, %s402
      %p411 = scmp.eq.s32.totalorder %s33, 1
      %p412 = por %p410, %p411
      %p413 = scmp.ne.s32.totalorder %s402, %s403
      %p414 = scmp.eq.s32.totalorder %s33, 0
      %p415 = por %p413, %p414
      %p416 = scmp.ne.s32.totalorder %s402, %s403
      %p417 = scmp.eq.s32.totalorder %s34, 1
      %p418 = por %p416, %p417
      %p420 = scmp.ne.s32.totalorder %s403, %s419
      %p421 = scmp.eq.s32.totalorder %s34, 0
      %p422 = por %p420, %p421
      %s423 = ssub.s32 %s35, %s47
      %p424 = scmp.eq.s32.totalorder %s423, 0
      %s426 = sadd.s32 %s425, 1
      %s427 = scalar_select %p424, %s425, %s426
      %p430 = pneg %p424
      %p431 = scmp.eq.s32.totalorder %s28, 1
      %p432 = por %p430, %p431
      %p433 = scmp.ne.s32.totalorder %s425, %s428
      %p434 = scmp.eq.s32.totalorder %s28, 0
      %p435 = por %p433, %p434
      %p436 = scmp.ne.s32.totalorder %s425, %s428
      %p437 = scmp.eq.s32.totalorder %s33, 1
      %p438 = por %p436, %p437
      %p439 = scmp.ne.s32.totalorder %s428, %s429
      %p440 = scmp.eq.s32.totalorder %s33, 0
      %p441 = por %p439, %p440
      %p442 = scmp.ne.s32.totalorder %s428, %s429
      %p443 = scmp.eq.s32.totalorder %s34, 1
      %p444 = por %p442, %p443
      %p446 = scmp.ne.s32.totalorder %s429, %s445
      %p447 = scmp.eq.s32.totalorder %s34, 0
      %p448 = por %p446, %p447
      %p449 = scmp.le.s32.totalorder 1, %s28
      %p450 = scmp.lt.s32.totalorder %s28, 3
      %p451 = pnand %p449, %p450
      %p452 = pneg %p451
      // Predicated region
      $region9: #{tpu_custom_call.1} parent=5 // pred_check
        _
      $region10: #{tpu_custom_call.1} parent=5 // pred_check_branch
        %454 = sbr.rel (%p451) target = $region12
      $region11: #{tpu_custom_call.1} parent=5 // pred_region
        %s455 = ssub.s32 %s28, 1
        // Predicated region
        $region13: #{tpu_custom_call.1} parent=11 // pred_check
          %p456 = pneg %p66
        $region14: #{tpu_custom_call.1} parent=11 // pred_check_branch
          %458 = sbr.rel (%p456) target = $region16
        $region15: #{tpu_custom_call.1} parent=11 // pred_region
          %s459 = smul.u32 4, %s37
          %p460 = scmp.lt.s32.totalorder %s459, 3
          %s461 = scalar_select %p460, %s459, 3
          %s462 = smul.addr %s461, 8
          %s463 = scalar_lea.vmem %s0, %s462
          %s464 = smul.u32 4, %s37
        $region16: #{tpu_custom_call.1} parent=11 // pred_fallthru
          _
        // Predicated region
        $region17: #{tpu_custom_call.1} parent=11 // pred_check
          %p465 = pneg %p87
        $region18: #{tpu_custom_call.1} parent=11 // pred_check_branch
          %467 = sbr.rel (%p465) target = $region20
        $region19: #{tpu_custom_call.1} parent=11 // pred_region
          _
        $region20: #{tpu_custom_call.1} parent=11 // pred_fallthru
          _
        // Predicated region
        $region21: #{tpu_custom_call.1} parent=11 // pred_check
          %p468 = pneg %p108
        $region22: #{tpu_custom_call.1} parent=11 // pred_check_branch
          %470 = sbr.rel (%p468) target = $region24
        $region23: #{tpu_custom_call.1} parent=11 // pred_region
          _
        $region24: #{tpu_custom_call.1} parent=11 // pred_fallthru
          _
        // Predicated region
        $region25: #{tpu_custom_call.1} parent=11 // pred_check
          %p471 = pneg %p129
        $region26: #{tpu_custom_call.1} parent=11 // pred_check_branch
          %473 = sbr.rel (%p471) target = $region28
        $region27: #{tpu_custom_call.1} parent=11 // pred_region
          _
        $region28: #{tpu_custom_call.1} parent=11 // pred_fallthru
          _
      $region12: #{tpu_custom_call.1} parent=5 // pred_fallthru
        _
      %p474 = scmp.lt.s32.totalorder %s28, 2
      // Predicated region
      $region29: #{tpu_custom_call.1} parent=5 // pred_check
        %p475 = pneg %p474
      $region30: #{tpu_custom_call.1} parent=5 // pred_check_branch
        %477 = sbr.rel (%p475) target = $region32
      $region31: #{tpu_custom_call.1} parent=5 // pred_region
        // Predicated region
        $region33: #{tpu_custom_call.1} parent=31 // pred_check
          %p478 = pneg %p149
        $region34: #{tpu_custom_call.1} parent=31 // pred_check_branch
          %480 = sbr.rel (%p478) target = $region36
        $region35: #{tpu_custom_call.1} parent=31 // pred_region
          %p481 = scmp.lt.s32.totalorder %s36, 1
          %s482 = scalar_select %p481, %s36, 1
          %s483 = scalar_lea.vmem %s4, %s482
        $region36: #{tpu_custom_call.1} parent=31 // pred_fallthru
          _
        // Predicated region
        $region37: #{tpu_custom_call.1} parent=31 // pred_check
          %p484 = pneg %p175
        $region38: #{tpu_custom_call.1} parent=31 // pred_check_branch
          %486 = sbr.rel (%p484) target = $region40
        $region39: #{tpu_custom_call.1} parent=31 // pred_region
          %p487 = scmp.lt.s32.totalorder %s36, 1
          %s488 = scalar_select %p487, %s36, 1
          %s489 = scalar_lea.vmem %s5, %s488
        $region40: #{tpu_custom_call.1} parent=31 // pred_fallthru
          _
        // Predicated region
        $region41: #{tpu_custom_call.1} parent=31 // pred_check
          %p490 = pneg %p201
        $region42: #{tpu_custom_call.1} parent=31 // pred_check_branch
          %492 = sbr.rel (%p490) target = $region44
        $region43: #{tpu_custom_call.1} parent=31 // pred_region
          %p493 = scmp.lt.s32.totalorder %s36, 1
          %s494 = scalar_select %p493, %s36, 1
          %s495 = smul.addr %s494, 4
          %s496 = smul.addr %s495, 4
          %s497 = scalar_lea.vmem %s6, %s496
        $region44: #{tpu_custom_call.1} parent=31 // pred_fallthru
          _
        // Predicated region
        $region45: #{tpu_custom_call.1} parent=31 // pred_check
          %p498 = pneg %p227
        $region46: #{tpu_custom_call.1} parent=31 // pred_check_branch
          %500 = sbr.rel (%p498) target = $region48
        $region47: #{tpu_custom_call.1} parent=31 // pred_region
          %s501 = sand.u32 %s217, 1
          %s502 = scalar_lea.sflag [#allocation4], %s501
          %s503 = sand.u32 %s217, 1
          %s504 = smul.addr %s503, 16
          %s505 = scalar_lea.vmem [#allocation3], %s504
          %507 = vsyncadd %s502, 0
          %s508 = smul.addr %s36, 4
          %s509 = smul.addr %s508, 4
          %s510 = scalar_lea.hbm %s7, %s509
          %s511 = sshll.u32 %s510, 4
          %s512 = int_to_ptr.hbm [resolvable:$true] %s511
          %s513 = sshll.u32 %s505, 4
          %s514 = int_to_ptr.vmem [resolvable:$true] %s513
          %519 = dma.hbm_to_vmem [thread:$0]  %s512, 256, %s514, %s502, 64, 64, 4
        $region48: #{tpu_custom_call.1} parent=31 // pred_fallthru
          _
        // Predicated region
        $region49: #{tpu_custom_call.1} parent=31 // pred_check
          %p520 = pneg %p253
        $region50: #{tpu_custom_call.1} parent=31 // pred_check_branch
          %522 = sbr.rel (%p520) target = $region52
        $region51: #{tpu_custom_call.1} parent=31 // pred_region
          %p523 = scmp.lt.s32.totalorder %s36, 1
          %s524 = scalar_select %p523, %s36, 1
          %s525 = scalar_lea.vmem %s8, %s524
        $region52: #{tpu_custom_call.1} parent=31 // pred_fallthru
          _
        // Predicated region
        $region53: #{tpu_custom_call.1} parent=31 // pred_check
          %p526 = pneg %p279
        $region54: #{tpu_custom_call.1} parent=31 // pred_check_branch
          %528 = sbr.rel (%p526) target = $region56
        $region55: #{tpu_custom_call.1} parent=31 // pred_region
          %p529 = scmp.lt.s32.totalorder %s36, 1
          %s530 = scalar_select %p529, %s36, 1
          %s531 = scalar_lea.vmem %s9, %s530
        $region56: #{tpu_custom_call.1} parent=31 // pred_fallthru
          _
        // Predicated region
        $region57: #{tpu_custom_call.1} parent=31 // pred_check
          %p532 = pneg %p305
        $region58: #{tpu_custom_call.1} parent=31 // pred_check_branch
          %534 = sbr.rel (%p532) target = $region60
        $region59: #{tpu_custom_call.1} parent=31 // pred_region
          %p535 = scmp.lt.s32.totalorder %s36, 1
          %s536 = scalar_select %p535, %s36, 1
          %s537 = scalar_lea.vmem %s10, %s536
        $region60: #{tpu_custom_call.1} parent=31 // pred_fallthru
          _
        // Predicated region
        $region61: #{tpu_custom_call.1} parent=31 // pred_check
          %p538 = pneg %p331
        $region62: #{tpu_custom_call.1} parent=31 // pred_check_branch
          %540 = sbr.rel (%p538) target = $region64
        $region63: #{tpu_custom_call.1} parent=31 // pred_region
          %s541 = sand.u32 %s321, 1
          %s542 = scalar_lea.sflag [#allocation7], %s541
          %s543 = sand.u32 %s321, 1
          %s544 = smul.addr %s543, 16
          %s545 = scalar_lea.vmem [#allocation6], %s544
          %547 = vsyncadd %s542, 0
          %s548 = smul.addr %s36, 4
          %s549 = smul.addr %s548, 4
          %s550 = scalar_lea.hbm %s11, %s549
          %s551 = sshll.u32 %s550, 4
          %s552 = int_to_ptr.hbm [resolvable:$true] %s551
          %s553 = sshll.u32 %s545, 4
          %s554 = int_to_ptr.vmem [resolvable:$true] %s553
          %559 = dma.hbm_to_vmem [thread:$0]  %s552, 256, %s554, %s542, 64, 64, 4
        $region64: #{tpu_custom_call.1} parent=31 // pred_fallthru
          _
        // Predicated region
        $region65: #{tpu_custom_call.1} parent=31 // pred_check
          %p560 = pneg %p357
        $region66: #{tpu_custom_call.1} parent=31 // pred_check_branch
          %562 = sbr.rel (%p560) target = $region68
        $region67: #{tpu_custom_call.1} parent=31 // pred_region
          %p563 = scmp.lt.s32.totalorder %s36, 1
          %s564 = scalar_select %p563, %s36, 1
          %s565 = scalar_lea.vmem %s12, %s564
        $region68: #{tpu_custom_call.1} parent=31 // pred_fallthru
          _
        // Predicated region
        $region69: #{tpu_custom_call.1} parent=31 // pred_check
          %p566 = pneg %p383
        $region70: #{tpu_custom_call.1} parent=31 // pred_check_branch
          %568 = sbr.rel (%p566) target = $region72
        $region71: #{tpu_custom_call.1} parent=31 // pred_region
          %p569 = scmp.lt.s32.totalorder %s36, 1
          %s570 = scalar_select %p569, %s36, 1
          %s571 = smul.addr %s570, 8
          %s572 = smul.addr %s571, 4
          %s573 = scalar_lea.vmem %s13, %s572
        $region72: #{tpu_custom_call.1} parent=31 // pred_fallthru
          _
        // Predicated region
        $region73: #{tpu_custom_call.1} parent=31 // pred_check
          %p574 = pneg %p409
        $region74: #{tpu_custom_call.1} parent=31 // pred_check_branch
          %576 = sbr.rel (%p574) target = $region76
        $region75: #{tpu_custom_call.1} parent=31 // pred_region
          %p577 = scmp.lt.s32.totalorder %s36, 1
          %s578 = scalar_select %p577, %s36, 1
          %s579 = scalar_lea.vmem %s14, %s578
        $region76: #{tpu_custom_call.1} parent=31 // pred_fallthru
          _
      $region32: #{tpu_custom_call.1} parent=5 // pred_fallthru
        _
      %p580 = scmp.le.s32.totalorder 1, %s28
      %p581 = scmp.lt.s32.totalorder %s28, 3
      %p582 = pnand %p580, %p581
      %p583 = pneg %p582
      // Predicated region
      $region77: #{tpu_custom_call.1} parent=5 // pred_check
        _
      $region78: #{tpu_custom_call.1} parent=5 // pred_check_branch
        %585 = sbr.rel (%p582) target = $region80
      $region79: #{tpu_custom_call.1} parent=5 // pred_region
        %s586 = ssub.s32 %s28, 1
        %s587 = sand.u32 %s220, 1
        %s588 = scalar_lea.sflag [#allocation4], %s587
        %s589 = sand.u32 %s220, 1
        %s590 = smul.addr %s589, 16
        %s591 = scalar_lea.vmem [#allocation3], %s590
        // Predicated region
        $region81: #{tpu_custom_call.1} parent=79 // pred_check
          %p592 = pneg %p233
        $region82: #{tpu_custom_call.1} parent=79 // pred_check_branch
          %594 = sbr.rel (%p592) target = $region84
        $region83: #{tpu_custom_call.1} parent=79 // pred_region
          %596 = dma.done %s588, 256
        $region84: #{tpu_custom_call.1} parent=79 // pred_fallthru
          _
        %s597 = sand.u32 %s324, 1
        %s598 = scalar_lea.sflag [#allocation7], %s597
        %s599 = sand.u32 %s324, 1
        %s600 = smul.addr %s599, 16
        %s601 = scalar_lea.vmem [#allocation6], %s600
        // Predicated region
        $region85: #{tpu_custom_call.1} parent=79 // pred_check
          %p602 = pneg %p337
        $region86: #{tpu_custom_call.1} parent=79 // pred_check_branch
          %604 = sbr.rel (%p602) target = $region88
        $region87: #{tpu_custom_call.1} parent=79 // pred_region
          %606 = dma.done %s598, 256
        $region88: #{tpu_custom_call.1} parent=79 // pred_fallthru
          _
        %s607 = smul.u32 4, %s37
        %p608 = scmp.lt.s32.totalorder %s607, 3
        %s609 = scalar_select %p608, %s607, 3
        %s610 = smul.addr %s609, 8
        %s611 = scalar_lea.vmem %s0, %s610
        %p612 = pneg %p66
        %p613 = pneg %p63
        %p614 = pneg %p87
        %p615 = pneg %p84
        %p616 = pneg %p108
        %p617 = pneg %p105
        %p618 = pneg %p129
        %p619 = pneg %p126
        %p620 = scmp.lt.s32.totalorder %s38, 1
        %s621 = scalar_select %p620, %s38, 1
        %s622 = scalar_lea.vmem %s4, %s621
        %p623 = pneg %p155
        %p624 = pneg %p152
        %p625 = scmp.lt.s32.totalorder %s38, 1
        %s626 = scalar_select %p625, %s38, 1
        %s627 = scalar_lea.vmem %s5, %s626
        %p628 = pneg %p181
        %p629 = pneg %p178
        %p630 = scmp.lt.s32.totalorder %s38, 1
        %s631 = scalar_select %p630, %s38, 1
        %s632 = smul.addr %s631, 4
        %s633 = smul.addr %s632, 4
        %s634 = scalar_lea.vmem %s6, %s633
        %p635 = pneg %p207
        %p636 = pneg %p204
        %s637 = sand.u32 %s220, 1
        %s638 = scalar_lea.sflag [#allocation4], %s637
        %s639 = sand.u32 %s220, 1
        %s640 = smul.addr %s639, 16
        %s641 = scalar_lea.vmem [#allocation3], %s640
        %p642 = pneg %p233
        %p643 = pneg %p230
        %p644 = scmp.lt.s32.totalorder %s38, 1
        %s645 = scalar_select %p644, %s38, 1
        %s646 = scalar_lea.vmem %s8, %s645
        %p647 = pneg %p259
        %p648 = pneg %p256
        %p649 = scmp.lt.s32.totalorder %s38, 1
        %s650 = scalar_select %p649, %s38, 1
        %s651 = scalar_lea.vmem %s9, %s650
        %p652 = pneg %p285
        %p653 = pneg %p282
        %p654 = scmp.lt.s32.totalorder %s38, 1
        %s655 = scalar_select %p654, %s38, 1
        %s656 = scalar_lea.vmem %s10, %s655
        %p657 = pneg %p311
        %p658 = pneg %p308
        %s659 = sand.u32 %s324, 1
        %s660 = scalar_lea.sflag [#allocation7], %s659
        %s661 = sand.u32 %s324, 1
        %s662 = smul.addr %s661, 16
        %s663 = scalar_lea.vmem [#allocation6], %s662
        %p664 = pneg %p337
        %p665 = pneg %p334
        %p666 = scmp.lt.s32.totalorder %s38, 1
        %s667 = scalar_select %p666, %s38, 1
        %s668 = scalar_lea.vmem %s12, %s667
        %p669 = pneg %p363
        %p670 = pneg %p360
        %p671 = scmp.lt.s32.totalorder %s38, 1
        %s672 = scalar_select %p671, %s38, 1
        %s673 = smul.addr %s672, 8
        %s674 = smul.addr %s673, 4
        %s675 = scalar_lea.vmem %s13, %s674
        %p676 = pneg %p389
        %p677 = pneg %p386
        %p678 = scmp.lt.s32.totalorder %s38, 1
        %s679 = scalar_select %p678, %s38, 1
        %s680 = scalar_lea.vmem %s14, %s679
        %p681 = pneg %p415
        %p682 = pneg %p412
        %p683 = pneg %p441
        %p684 = pneg %p438
        %s685 = smul.u32 4, %s37
        %p686 = scmp.lt.s32.totalorder %s685, 3
        %s687 = scalar_select %p686, %s685, 3
        %s688 = smul.addr %s687, 8
        %s689 = scalar_lea.vmem %s0, %s688
        %s690 = smul.u32 4, %s37
        %p691 = scmp.lt.s32.totalorder %s38, 1
        %s692 = scalar_select %p691, %s38, 1
        %s693 = scalar_lea.vmem %s4, %s692
        %p694 = scmp.lt.s32.totalorder %s38, 1
        %s695 = scalar_select %p694, %s38, 1
        %s696 = scalar_lea.vmem %s5, %s695
        %p697 = scmp.lt.s32.totalorder %s38, 1
        %s698 = scalar_select %p697, %s38, 1
        %s699 = smul.addr %s698, 4
        %s700 = smul.addr %s699, 4
        %s701 = scalar_lea.vmem %s6, %s700
        %p702 = scmp.lt.s32.totalorder %s38, 1
        %s703 = scalar_select %p702, %s38, 1
        %s704 = scalar_lea.vmem %s8, %s703
        %p705 = scmp.lt.s32.totalorder %s38, 1
        %s706 = scalar_select %p705, %s38, 1
        %s707 = scalar_lea.vmem %s9, %s706
        %p708 = scmp.lt.s32.totalorder %s38, 1
        %s709 = scalar_select %p708, %s38, 1
        %s710 = scalar_lea.vmem %s10, %s709
        %p711 = scmp.lt.s32.totalorder %s38, 1
        %s712 = scalar_select %p711, %s38, 1
        %s713 = scalar_lea.vmem %s12, %s712
        %p714 = scmp.lt.s32.totalorder %s38, 1
        %s715 = scalar_select %p714, %s38, 1
        %s716 = smul.addr %s715, 8
        %s717 = smul.addr %s716, 4
        %s718 = scalar_lea.vmem %s13, %s717
        %p719 = scmp.lt.s32.totalorder %s38, 1
        %s720 = scalar_select %p719, %s38, 1
        %s721 = scalar_lea.vmem %s14, %s720
        %s722 = smul.u32 4, %s37
        %p724 = scmp.eq.s32.totalorder %s38, 0
        // Predicated region
        $region89: #{tpu_custom_call.1} parent=79 // pred_check
          %p725 = pneg %p724
        $region90: #{tpu_custom_call.1} parent=79 // pred_check_branch
          %727 = sbr.rel (%p725) target = $region92
        $region91: #{tpu_custom_call.1} parent=79 // pred_region
          %v728 = vld [vmem:[%s689] sm:$0xff]
          %v729 = vld [vmem:[%s689 + $0x8] sm:$0xff]
          %v730 = vld [vmem:[%s689 + $0x10] sm:$0xff]
          %v731 = vld [vmem:[%s689 + $0x18] sm:$0xff]
          %v732 = vpack.c.bf16 %v729, %v728
          %v733 = vpack.c.bf16 %v731, %v730
          %v734 = vld [vmem:[%s1] sm:$0xf]
          %v735 = vld [vmem:[%s1 + $0x4] sm:$0xf]
          %v736 = vld [vmem:[%s1 + $0x8] sm:$0xf]
          %v737 = vld [vmem:[%s1 + $0xc] sm:$0xf]
          %v738 = vld [vmem:[%s1 + $0x10] sm:$0xf]
          %v739 = vld [vmem:[%s1 + $0x14] sm:$0xf]
          %v740 = vld [vmem:[%s2] sm:$0x1]
          %v742 = vperm.slane %v740, 0
          %v750 = vunpack.c.l.b16 %v734
          %v751 = vunpack.c.l.b16 %v735
          %v752 = vunpack.c.l.b16 %v736
          %v753 = vunpack.c.l.b16 %v737
          %v754 = vunpack.c.l.b16 %v738
          %v755 = vunpack.c.l.b16 %v739
          %v756 = vpack.c.b16 %v751, %v750
          %v757 = vpack.c.b16 %v753, %v752
          %v758 = vpack.c.b16 %v755, %v754
          %vm762 = vcmask 392192
          %v764 = vsel %vm762, %v732, 0
          %v767 = vsel %vm762, %v733, 0
          %769 = vmatpush.bf16.msra.mxu0 0
          %770 = vmatpush.bf16.msra.mxu0 0
          %771 = vmatpush.bf16.msra.mxu0 0
          %772 = vmatpush.bf16.msra.mxu0 0
          %773 = vmatpush.bf16.msra.mxu0 0
          %774 = vmatpush.bf16.msra.mxu0 %v758
          %775 = vmatpush.bf16.msra.mxu0 %v757
          %776 = vmatpush.bf16.msra.mxu0 %v756
          %777 = vmatmul.bf16.gmra.mxu0 %v764
          %v778 = vpop.f32.mrf.mxu0
          %v779 = vadd.f32 %v742, %v778
          %v780 = vpop.f32.mrf.mxu0
          %v781 = vadd.f32 %v742, %v780
          %782 = vmatmul.bf16.gmra.mxu0 %v767
          %v783 = vpop.f32.mrf.mxu0
          %v784 = vadd.f32 %v742, %v783
          %v785 = vpop.f32.mrf.mxu0
          %v786 = vadd.f32 %v742, %v785
          %787 = vdwg.mxu0
          %v788 = vld [vmem:[%s3] sm:$0xff]
          %v789 = vld [vmem:[%s3 + $0x8] sm:$0xff]
          %v790 = vld [vmem:[%s3 + $0x10] sm:$0xff]
          %v791 = vld [vmem:[%s3 + $0x18] sm:$0xff]
          %v792 = vadd.f32 %v779, %v788
          %v793 = vadd.f32 %v781, %v789
          %v794 = vadd.f32 %v784, %v790
          %v795 = vadd.f32 %v786, %v791
          %vm796 = vcmask 261120
          %797 = vst.msk [vmem:[#allocation2] sm:$0xff] %vm796, %v792
          %798 = vst.msk [vmem:[#allocation2 + $0x8] sm:$0xff] %vm796, %v793
          %799 = vst.msk [vmem:[#allocation2 + $0x10] sm:$0xff] %vm796, %v794
          %800 = vst.msk [vmem:[#allocation2 + $0x18] sm:$0xff] %vm796, %v795
        $region92: #{tpu_custom_call.1} parent=79 // pred_fallthru
          _
        %v801 = vld [vmem:[#allocation2] sm:$0xff]
        %v802 = vld [vmem:[#allocation2 + $0x8] sm:$0xff]
        %v803 = vld [vmem:[#allocation2 + $0x10] sm:$0xff]
        %v804 = vld [vmem:[#allocation2 + $0x18] sm:$0xff]
        %v805 = vld [vmem:[%s693] sm:$0x1]
        %v806 = vld [vmem:[%s696] sm:$0x1]
        %vm807 = vcmask 261120
        %v808 = vsel %vm807, %v801, 0.0
        %809 = vadd.xlane.f32.xlu0 %v808
        %v810 = vpop.xlane.xlu0 %809
        %v811 = vsel %vm807, %v802, 0.0
        %812 = vadd.xlane.f32.xlu0 %v811
        %v813 = vpop.xlane.xlu0 %812
        %v814 = vsel %vm807, %v803, 0.0
        %815 = vadd.xlane.f32.xlu0 %v814
        %v816 = vpop.xlane.xlu0 %815
        %v817 = vsel %vm807, %v804, 0.0
        %818 = vadd.xlane.f32.xlu0 %v817
        %v819 = vpop.xlane.xlu0 %818
        %v820 = vrcp.pop 32.0
        %v821 = vmul.f32 32.0, %v820
        %v822 = vsub.f32 1.0, %v821
        %v823 = vmul.f32 %v820, %v822
        %v824 = vadd.f32 %v820, %v823
        %vm825 = vweird.f32 %v820
        %v826 = vsel %vm825, %v820, %v824
        %v827 = vmul.f32 %v810, %v826
        %v828 = vmul.f32 %v813, %v826
        %v829 = vmul.f32 %v816, %v826
        %v830 = vmul.f32 %v819, %v826
        %v831 = vsub.f32 %v801, %v827
        %v832 = vsub.f32 %v802, %v828
        %v833 = vsub.f32 %v803, %v829
        %v834 = vsub.f32 %v804, %v830
        %v835 = vmul.f32 %v831, %v831
        %v836 = vmul.f32 %v832, %v832
        %v837 = vmul.f32 %v833, %v833
        %v838 = vmul.f32 %v834, %v834
        %v839 = vsel %vm807, %v835, 0.0
        %840 = vadd.xlane.f32.xlu0 %v839
        %v841 = vpop.xlane.xlu0 %840
        %v842 = vsel %vm807, %v836, 0.0
        %843 = vadd.xlane.f32.xlu0 %v842
        %v844 = vpop.xlane.xlu0 %843
        %v845 = vsel %vm807, %v837, 0.0
        %846 = vadd.xlane.f32.xlu0 %v845
        %v847 = vpop.xlane.xlu0 %846
        %v848 = vsel %vm807, %v838, 0.0
        %849 = vadd.xlane.f32.xlu0 %v848
        %v850 = vpop.xlane.xlu0 %849
        %v851 = vmul.f32 %v841, %v826
        %v852 = vmul.f32 %v844, %v826
        %v853 = vmul.f32 %v847, %v826
        %v854 = vmul.f32 %v850, %v826
        %v855 = vadd.f32 %v851, 1e-05
        %v856 = vadd.f32 %v852, 1e-05
        %v857 = vadd.f32 %v853, 1e-05
        %v858 = vadd.f32 %v854, 1e-05
        %v859 = vrsqrt.pop %v855
        %v860 = vmul.f32 %v859, %v855
        %v861 = vmul.f32 %v860, %v859
        %v862 = vmul.f32 0.5, %v861
        %v863 = vsub.f32 1.5, %v862
        %v864 = vmul.f32 %v859, %v863
        %vm865 = vweird.f32 %v855
        %vm866 = vweird.f32 %v859
        %vm867 = vmor %vm865, %vm866
        %v868 = vsel %vm867, %v859, %v864
        %v869 = vrsqrt.pop %v856
        %v870 = vmul.f32 %v869, %v856
        %v871 = vmul.f32 %v870, %v869
        %v872 = vmul.f32 0.5, %v871
        %v873 = vsub.f32 1.5, %v872
        %v874 = vmul.f32 %v869, %v873
        %vm875 = vweird.f32 %v856
        %vm876 = vweird.f32 %v869
        %vm877 = vmor %vm875, %vm876
        %v878 = vsel %vm877, %v869, %v874
        %v879 = vrsqrt.pop %v857
        %v880 = vmul.f32 %v879, %v857
        %v881 = vmul.f32 %v880, %v879
        %v882 = vmul.f32 0.5, %v881
        %v883 = vsub.f32 1.5, %v882
        %v884 = vmul.f32 %v879, %v883
        %vm885 = vweird.f32 %v857
        %vm886 = vweird.f32 %v879
        %vm887 = vmor %vm885, %vm886
        %v888 = vsel %vm887, %v879, %v884
        %v889 = vrsqrt.pop %v858
        %v890 = vmul.f32 %v889, %v858
        %v891 = vmul.f32 %v890, %v889
        %v892 = vmul.f32 0.5, %v891
        %v893 = vsub.f32 1.5, %v892
        %v894 = vmul.f32 %v889, %v893
        %vm895 = vweird.f32 %v858
        %vm896 = vweird.f32 %v889
        %vm897 = vmor %vm895, %vm896
        %v898 = vsel %vm897, %v889, %v894
        %v899 = vmul.f32 %v831, %v868
        %v900 = vmul.f32 %v832, %v878
        %v901 = vmul.f32 %v833, %v888
        %v902 = vmul.f32 %v834, %v898
        %v904 = vperm.slane %v805, 0
        %v906 = vmul.f32 %v899, %v904
        %v907 = vmul.f32 %v900, %v904
        %v908 = vmul.f32 %v901, %v904
        %v909 = vmul.f32 %v902, %v904
        %v911 = vperm.slane %v806, 0
        %v913 = vadd.f32 %v906, %v911
        %v914 = vadd.f32 %v907, %v911
        %v915 = vadd.f32 %v908, %v911
        %v916 = vadd.f32 %v909, %v911
        %v917 = vpack.c.bf16 %v914, %v913
        %v918 = vpack.c.bf16 %v916, %v915
        %v919 = vld [vmem:[%s701] sm:$0xf]
        %v920 = vld [vmem:[%s701 + $0x4] sm:$0xf]
        %v921 = vld [vmem:[%s701 + $0x8] sm:$0xf]
        %v922 = vld [vmem:[%s701 + $0xc] sm:$0xf]
        %v927 = vunpack.c.l.b16 %v919
        %v928 = vunpack.c.l.b16 %v920
        %v929 = vunpack.c.l.b16 %v921
        %v930 = vunpack.c.l.b16 %v922
        %v931 = vpack.c.b16 %v928, %v927
        %v932 = vpack.c.b16 %v930, %v929
        %v936 = vsel %vm807, %v917, 0
        %v939 = vsel %vm807, %v918, 0
        %941 = vmatpush.bf16.msra.mxu0 0
        %942 = vmatpush.bf16.msra.mxu0 0
        %943 = vmatpush.bf16.msra.mxu0 0
        %944 = vmatpush.bf16.msra.mxu0 0
        %945 = vmatpush.bf16.msra.mxu0 0
        %946 = vmatpush.bf16.msra.mxu0 0
        %947 = vmatpush.bf16.msra.mxu0 %v932
        %948 = vmatpush.bf16.msra.mxu0 %v931
        %949 = vmatmul.bf16.gmra.mxu0 %v936
        %v950 = vpop.f32.mrf.mxu0
        %v951 = vadd.f32 0.0, %v950
        %v952 = vpop.f32.mrf.mxu0
        %v953 = vadd.f32 0.0, %v952
        %954 = vmatmul.bf16.gmra.mxu0 %v939
        %v955 = vpop.f32.mrf.mxu0
        %v956 = vadd.f32 0.0, %v955
        %v957 = vpop.f32.mrf.mxu0
        %v958 = vadd.f32 0.0, %v957
        %959 = vdwg.mxu0
        %v960 = vpack.c.bf16 %v951, %v951
        %v961 = vpack.c.bf16 %v953, %v953
        %v962 = vpack.c.bf16 %v956, %v956
        %v963 = vpack.c.bf16 %v958, %v958
        %966 = vrot.lane.b32.xlu0 %v960, 112
        %v967 = vpop.permute.xlu0 %966
        %968 = vrot.lane.b32.xlu0 %v961, 112
        %v969 = vpop.permute.xlu0 %968
        %972 = vrot.lane.b32.xlu0 %v962, 112
        %v973 = vpop.permute.xlu0 %972
        %974 = vrot.lane.b32.xlu0 %v963, 112
        %v975 = vpop.permute.xlu0 %974
        %v976 = vunpack.c.l.b16 %v960
        %v977 = vunpack.c.l.b16 %v961
        %v978 = vpack.c.b16 %v977, %v976
        %979 = vrot.lane.b32.xlu0 %v978, 96
        %v980 = vpop.permute.xlu0 %979
        %vm981 = vcmask 130048
        %v983 = vsel %vm981, %v978, 0
        %v986 = vsel %vm981, %v980, 0
        %988 = vmatpush.bf16.xpose.msra.mxu0 0
        %989 = vmatpush.bf16.xpose.msra.mxu0 0
        %990 = vmatpush.bf16.xpose.msra.mxu0 0
        %991 = vmatpush.bf16.xpose.msra.mxu0 0
        %992 = vmatpush.bf16.xpose.msra.mxu0 0
        %993 = vmatpush.bf16.xpose.msra.mxu0 0
        %994 = vmatpush.bf16.xpose.msra.mxu0 0
        %995 = vmatpush.bf16.xpose.msra.mxu0 %v986
        %996 = vmatmul.bf16.gmra.mxu0 %v983
        %v997 = vpop.f32.mrf.mxu0
        %v998 = vadd.f32 0.0, %v997
        %v999 = vpop.f32.mrf.mxu0
        %v1000 = vadd.f32 0.0, %v999
        %1001 = vdwg.mxu0
        %v1002 = vunpack.c.l.b16 %v967
        %v1003 = vunpack.c.l.b16 %v969
        %v1004 = vpack.c.b16 %v1003, %v1002
        %1005 = vrot.lane.b32.xlu0 %v1004, 96
        %v1006 = vpop.permute.xlu0 %1005
        %v1008 = vsel %vm981, %v1004, 0
        %v1011 = vsel %vm981, %v1006, 0
        %1013 = vmatpush.bf16.xpose.msra.mxu0 0
        %1014 = vmatpush.bf16.xpose.msra.mxu0 0
        %1015 = vmatpush.bf16.xpose.msra.mxu0 0
        %1016 = vmatpush.bf16.xpose.msra.mxu0 0
        %1017 = vmatpush.bf16.xpose.msra.mxu0 0
        %1018 = vmatpush.bf16.xpose.msra.mxu0 0
        %1019 = vmatpush.bf16.xpose.msra.mxu0 0
        %1020 = vmatpush.bf16.xpose.msra.mxu0 %v1011
        %1021 = vmatmul.bf16.gmra.mxu0 %v1008
        %v1022 = vpop.f32.mrf.mxu0
        %v1023 = vadd.f32 0.0, %v1022
        %v1024 = vpop.f32.mrf.mxu0
        %v1025 = vadd.f32 0.0, %v1024
        %1026 = vdwg.mxu0
        %v1027 = vunpack.c.l.b16 %v962
        %v1028 = vunpack.c.l.b16 %v963
        %v1029 = vpack.c.b16 %v1028, %v1027
        %1030 = vrot.lane.b32.xlu0 %v1029, 96
        %v1031 = vpop.permute.xlu0 %1030
        %v1033 = vsel %vm981, %v1029, 0
        %v1036 = vsel %vm981, %v1031, 0
        %1038 = vmatpush.bf16.xpose.msra.mxu0 0
        %1039 = vmatpush.bf16.xpose.msra.mxu0 0
        %1040 = vmatpush.bf16.xpose.msra.mxu0 0
        %1041 = vmatpush.bf16.xpose.msra.mxu0 0
        %1042 = vmatpush.bf16.xpose.msra.mxu0 0
        %1043 = vmatpush.bf16.xpose.msra.mxu0 0
        %1044 = vmatpush.bf16.xpose.msra.mxu0 0
        %1045 = vmatpush.bf16.xpose.msra.mxu0 %v1036
        %1046 = vmatmul.bf16.gmra.mxu0 %v1033
        %v1047 = vpop.f32.mrf.mxu0
        %v1048 = vadd.f32 0.0, %v1047
        %v1049 = vpop.f32.mrf.mxu0
        %v1050 = vadd.f32 0.0, %v1049
        %1051 = vdwg.mxu0
        %v1052 = vunpack.c.l.b16 %v973
        %v1053 = vunpack.c.l.b16 %v975
        %v1054 = vpack.c.b16 %v1053, %v1052
        %1055 = vrot.lane.b32.xlu0 %v1054, 96
        %v1056 = vpop.permute.xlu0 %1055
        %v1058 = vsel %vm981, %v1054, 0
        %v1061 = vsel %vm981, %v1056, 0
        %1063 = vmatpush.bf16.xpose.msra.mxu0 0
        %1064 = vmatpush.bf16.xpose.msra.mxu0 0
        %1065 = vmatpush.bf16.xpose.msra.mxu0 0
        %1066 = vmatpush.bf16.xpose.msra.mxu0 0
        %1067 = vmatpush.bf16.xpose.msra.mxu0 0
        %1068 = vmatpush.bf16.xpose.msra.mxu0 0
        %1069 = vmatpush.bf16.xpose.msra.mxu0 0
        %1070 = vmatpush.bf16.xpose.msra.mxu0 %v1061
        %1071 = vmatmul.bf16.gmra.mxu0 %v1058
        %v1072 = vpop.f32.mrf.mxu0
        %v1073 = vadd.f32 0.0, %v1072
        %v1074 = vpop.f32.mrf.mxu0
        %v1075 = vadd.f32 0.0, %v1074
        %1076 = vdwg.mxu0
        %v1077 = vsel %vm981, %v998, -inf
        %1078 = vmax.xlane.f32.xlu0 %v1077
        %v1079 = vpop.xlane.xlu0 %1078
        %v1080 = vsel %vm981, %v1000, -inf
        %1081 = vmax.xlane.f32.xlu0 %v1080
        %v1082 = vpop.xlane.xlu0 %1081
        %v1083 = vsel %vm981, %v1023, -inf
        %1084 = vmax.xlane.f32.xlu0 %v1083
        %v1085 = vpop.xlane.xlu0 %1084
        %v1086 = vsel %vm981, %v1025, -inf
        %1087 = vmax.xlane.f32.xlu0 %v1086
        %v1088 = vpop.xlane.xlu0 %1087
        %v1089 = vsel %vm981, %v1048, -inf
        %1090 = vmax.xlane.f32.xlu0 %v1089
        %v1091 = vpop.xlane.xlu0 %1090
        %v1092 = vsel %vm981, %v1050, -inf
        %1093 = vmax.xlane.f32.xlu0 %v1092
        %v1094 = vpop.xlane.xlu0 %1093
        %v1095 = vsel %vm981, %v1073, -inf
        %1096 = vmax.xlane.f32.xlu0 %v1095
        %v1097 = vpop.xlane.xlu0 %1096
        %v1098 = vsel %vm981, %v1075, -inf
        %1099 = vmax.xlane.f32.xlu0 %v1098
        %v1100 = vpop.xlane.xlu0 %1099
        %v1101 = vsub.f32 %v998, %v1079
        %v1102 = vsub.f32 %v1000, %v1082
        %v1103 = vsub.f32 %v1023, %v1085
        %v1104 = vsub.f32 %v1025, %v1088
        %v1105 = vsub.f32 %v1048, %v1091
        %v1106 = vsub.f32 %v1050, %v1094
        %v1107 = vsub.f32 %v1073, %v1097
        %v1108 = vsub.f32 %v1075, %v1100
        %v1109 = vmul.f32 %v1101, 1.442695
        %v1110 = vpow.pop %v1109
        %v1111 = vmul.f32 %v1102, 1.442695
        %v1112 = vpow.pop %v1111
        %v1113 = vmul.f32 %v1103, 1.442695
        %v1114 = vpow.pop %v1113
        %v1115 = vmul.f32 %v1104, 1.442695
        %v1116 = vpow.pop %v1115
        %v1117 = vmul.f32 %v1105, 1.442695
        %v1118 = vpow.pop %v1117
        %v1119 = vmul.f32 %v1106, 1.442695
        %v1120 = vpow.pop %v1119
        %v1121 = vmul.f32 %v1107, 1.442695
        %v1122 = vpow.pop %v1121
        %v1123 = vmul.f32 %v1108, 1.442695
        %v1124 = vpow.pop %v1123
        %v1125 = vsel %vm981, %v1110, 0.0
        %1126 = vadd.xlane.f32.xlu0 %v1125
        %v1127 = vpop.xlane.xlu0 %1126
        %v1128 = vsel %vm981, %v1112, 0.0
        %1129 = vadd.xlane.f32.xlu0 %v1128
        %v1130 = vpop.xlane.xlu0 %1129
        %v1131 = vsel %vm981, %v1114, 0.0
        %1132 = vadd.xlane.f32.xlu0 %v1131
        %v1133 = vpop.xlane.xlu0 %1132
        %v1134 = vsel %vm981, %v1116, 0.0
        %1135 = vadd.xlane.f32.xlu0 %v1134
        %v1136 = vpop.xlane.xlu0 %1135
        %v1137 = vsel %vm981, %v1118, 0.0
        %1138 = vadd.xlane.f32.xlu0 %v1137
        %v1139 = vpop.xlane.xlu0 %1138
        %v1140 = vsel %vm981, %v1120, 0.0
        %1141 = vadd.xlane.f32.xlu0 %v1140
        %v1142 = vpop.xlane.xlu0 %1141
        %v1143 = vsel %vm981, %v1122, 0.0
        %1144 = vadd.xlane.f32.xlu0 %v1143
        %v1145 = vpop.xlane.xlu0 %1144
        %v1146 = vsel %vm981, %v1124, 0.0
        %1147 = vadd.xlane.f32.xlu0 %v1146
        %v1148 = vpop.xlane.xlu0 %1147
        %v1149 = vrcp.pop %v1127
        %v1150 = vrcp.pop %v1130
        %v1151 = vrcp.pop %v1133
        %v1152 = vrcp.pop %v1136
        %v1153 = vrcp.pop %v1139
        %v1154 = vrcp.pop %v1142
        %v1155 = vrcp.pop %v1145
        %v1156 = vrcp.pop %v1148
        %v1157 = vmul.f32 %v1110, %v1149
        %v1158 = vmul.f32 %v1112, %v1150
        %v1159 = vmul.f32 %v1114, %v1151
        %v1160 = vmul.f32 %v1116, %v1152
        %v1161 = vmul.f32 %v1118, %v1153
        %v1162 = vmul.f32 %v1120, %v1154
        %v1163 = vmul.f32 %v1122, %v1155
        %v1164 = vmul.f32 %v1124, %v1156
        %v1165 = vpack.c.bf16 %v1157, %v1157
        %v1166 = vpack.c.bf16 %v1158, %v1158
        %v1167 = vpack.c.bf16 %v1159, %v1159
        %v1168 = vpack.c.bf16 %v1160, %v1160
        %v1169 = vpack.c.bf16 %v1161, %v1161
        %v1170 = vpack.c.bf16 %v1162, %v1162
        %v1171 = vpack.c.bf16 %v1163, %v1163
        %v1172 = vpack.c.bf16 %v1164, %v1164
        %v1175 = vunpack.c.l.b16 %v1165
        %v1176 = vunpack.c.l.b16 %v1166
        %v1177 = vpack.c.b16 %v1176, %v1175
        %1178 = vrot.lane.b32.xlu0 %v978, 64
        %v1179 = vpop.permute.xlu0 %1178
        %v1182 = vsel %vm981, %v1177, 0
        %1184 = vmatpush.bf16.msra.mxu0 0
        %1185 = vmatpush.bf16.msra.mxu0 0
        %1186 = vmatpush.bf16.msra.mxu0 0
        %1187 = vmatpush.bf16.msra.mxu0 0
        %1188 = vmatpush.bf16.msra.mxu0 0
        %1189 = vmatpush.bf16.msra.mxu0 0
        %1190 = vmatpush.bf16.msra.mxu0 0
        %1191 = vmatpush.bf16.msra.mxu0 %v1179
        %1192 = vmatmul.bf16.gmra.mxu0 %v1182
        %v1193 = vpop.f32.mrf.mxu0
        %v1194 = vadd.f32 0.0, %v1193
        %v1195 = vpop.f32.mrf.mxu0
        %v1196 = vadd.f32 0.0, %v1195
        %1197 = vdwg.mxu0
        %v1200 = vunpack.c.l.b16 %v1167
        %v1201 = vunpack.c.l.b16 %v1168
        %v1202 = vpack.c.b16 %v1201, %v1200
        %1203 = vrot.lane.b32.xlu0 %v1004, 64
        %v1204 = vpop.permute.xlu0 %1203
        %v1207 = vsel %vm981, %v1202, 0
        %1209 = vmatpush.bf16.msra.mxu0 0
        %1210 = vmatpush.bf16.msra.mxu0 0
        %1211 = vmatpush.bf16.msra.mxu0 0
        %1212 = vmatpush.bf16.msra.mxu0 0
        %1213 = vmatpush.bf16.msra.mxu0 0
        %1214 = vmatpush.bf16.msra.mxu0 0
        %1215 = vmatpush.bf16.msra.mxu0 0
        %1216 = vmatpush.bf16.msra.mxu0 %v1204
        %1217 = vmatmul.bf16.gmra.mxu0 %v1207
        %v1218 = vpop.f32.mrf.mxu0
        %v1219 = vadd.f32 0.0, %v1218
        %v1220 = vpop.f32.mrf.mxu0
        %v1221 = vadd.f32 0.0, %v1220
        %1222 = vdwg.mxu0
        %v1225 = vunpack.c.l.b16 %v1169
        %v1226 = vunpack.c.l.b16 %v1170
        %v1227 = vpack.c.b16 %v1226, %v1225
        %1228 = vrot.lane.b32.xlu0 %v1029, 64
        %v1229 = vpop.permute.xlu0 %1228
        %v1232 = vsel %vm981, %v1227, 0
        %1234 = vmatpush.bf16.msra.mxu0 0
        %1235 = vmatpush.bf16.msra.mxu0 0
        %1236 = vmatpush.bf16.msra.mxu0 0
        %1237 = vmatpush.bf16.msra.mxu0 0
        %1238 = vmatpush.bf16.msra.mxu0 0
        %1239 = vmatpush.bf16.msra.mxu0 0
        %1240 = vmatpush.bf16.msra.mxu0 0
        %1241 = vmatpush.bf16.msra.mxu0 %v1229
        %1242 = vmatmul.bf16.gmra.mxu0 %v1232
        %v1243 = vpop.f32.mrf.mxu0
        %v1244 = vadd.f32 0.0, %v1243
        %v1245 = vpop.f32.mrf.mxu0
        %v1246 = vadd.f32 0.0, %v1245
        %1247 = vdwg.mxu0
        %v1250 = vunpack.c.l.b16 %v1171
        %v1251 = vunpack.c.l.b16 %v1172
        %v1252 = vpack.c.b16 %v1251, %v1250
        %1253 = vrot.lane.b32.xlu0 %v1054, 64
        %v1254 = vpop.permute.xlu0 %1253
        %v1257 = vsel %vm981, %v1252, 0
        %1259 = vmatpush.bf16.msra.mxu0 0
        %1260 = vmatpush.bf16.msra.mxu0 0
        %1261 = vmatpush.bf16.msra.mxu0 0
        %1262 = vmatpush.bf16.msra.mxu0 0
        %1263 = vmatpush.bf16.msra.mxu0 0
        %1264 = vmatpush.bf16.msra.mxu0 0
        %1265 = vmatpush.bf16.msra.mxu0 0
        %1266 = vmatpush.bf16.msra.mxu0 %v1254
        %1267 = vmatmul.bf16.gmra.mxu0 %v1257
        %v1268 = vpop.f32.mrf.mxu0
        %v1269 = vadd.f32 0.0, %v1268
        %v1270 = vpop.f32.mrf.mxu0
        %v1271 = vadd.f32 0.0, %v1270
        %1272 = vdwg.mxu0
        %1275 = vrot.lane.b32.xlu0 %v1219, 16
        %v1276 = vpop.permute.xlu0 %1275
        %1277 = vrot.lane.b32.xlu0 %v1221, 16
        %v1278 = vpop.permute.xlu0 %1277
        %v1281 = vsel %vm981, %v1194, %v1276
        %v1282 = vsel %vm981, %v1196, %v1278
        %1285 = vrot.lane.b32.xlu0 %v1269, 16
        %v1286 = vpop.permute.xlu0 %1285
        %1287 = vrot.lane.b32.xlu0 %v1271, 16
        %v1288 = vpop.permute.xlu0 %1287
        %v1291 = vsel %vm981, %v1244, %v1286
        %v1292 = vsel %vm981, %v1246, %v1288
        %v1293 = vpack.c.bf16 %v1282, %v1281
        %v1294 = vpack.c.bf16 %v1292, %v1291
        %v1295 = vld [vmem:[%s591] sm:$0xf]
        %v1296 = vld [vmem:[%s591 + $0x4] sm:$0xf]
        %v1297 = vld [vmem:[%s591 + $0x8] sm:$0xf]
        %v1298 = vld [vmem:[%s591 + $0xc] sm:$0xf]
        %v1303 = vunpack.c.l.b16 %v1295
        %v1304 = vunpack.c.l.b16 %v1296
        %v1305 = vunpack.c.l.b16 %v1297
        %v1306 = vunpack.c.l.b16 %v1298
        %v1307 = vpack.c.b16 %v1304, %v1303
        %v1308 = vpack.c.b16 %v1306, %v1305
        %v1312 = vsel %vm807, %v1293, 0
        %v1315 = vsel %vm807, %v1294, 0
        %1317 = vmatpush.bf16.msra.mxu0 0
        %1318 = vmatpush.bf16.msra.mxu0 0
        %1319 = vmatpush.bf16.msra.mxu0 0
        %1320 = vmatpush.bf16.msra.mxu0 0
        %1321 = vmatpush.bf16.msra.mxu0 0
        %1322 = vmatpush.bf16.msra.mxu0 0
        %1323 = vmatpush.bf16.msra.mxu0 %v1308
        %1324 = vmatpush.bf16.msra.mxu0 %v1307
        %1325 = vmatmul.bf16.gmra.mxu0 %v1312
        %v1326 = vpop.f32.mrf.mxu0
        %v1327 = vadd.f32 0.0, %v1326
        %v1328 = vpop.f32.mrf.mxu0
        %v1329 = vadd.f32 0.0, %v1328
        %1330 = vmatmul.bf16.gmra.mxu0 %v1315
        %v1331 = vpop.f32.mrf.mxu0
        %v1332 = vadd.f32 0.0, %v1331
        %v1333 = vpop.f32.mrf.mxu0
        %v1334 = vadd.f32 0.0, %v1333
        %1335 = vdwg.mxu0
        %v1336 = vadd.f32 %v801, %v1327
        %v1337 = vadd.f32 %v802, %v1329
        %v1338 = vadd.f32 %v803, %v1332
        %v1339 = vadd.f32 %v804, %v1334
        %v1340 = vld [vmem:[%s704] sm:$0x1]
        %v1342 = vperm.slane %v1340, 0
        %v1344 = vadd.f32 %v1336, %v1342
        %v1345 = vadd.f32 %v1337, %v1342
        %v1346 = vadd.f32 %v1338, %v1342
        %v1347 = vadd.f32 %v1339, %v1342
        %v1348 = vld [vmem:[%s707] sm:$0x1]
        %v1349 = vld [vmem:[%s710] sm:$0x1]
        %v1350 = vsel %vm807, %v1344, 0.0
        %1351 = vadd.xlane.f32.xlu0 %v1350
        %v1352 = vpop.xlane.xlu0 %1351
        %v1353 = vsel %vm807, %v1345, 0.0
        %1354 = vadd.xlane.f32.xlu0 %v1353
        %v1355 = vpop.xlane.xlu0 %1354
        %v1356 = vsel %vm807, %v1346, 0.0
        %1357 = vadd.xlane.f32.xlu0 %v1356
        %v1358 = vpop.xlane.xlu0 %1357
        %v1359 = vsel %vm807, %v1347, 0.0
        %1360 = vadd.xlane.f32.xlu0 %v1359
        %v1361 = vpop.xlane.xlu0 %1360
        %v1362 = vmul.f32 %v1352, %v826
        %v1363 = vmul.f32 %v1355, %v826
        %v1364 = vmul.f32 %v1358, %v826
        %v1365 = vmul.f32 %v1361, %v826
        %v1366 = vsub.f32 %v1344, %v1362
        %v1367 = vsub.f32 %v1345, %v1363
        %v1368 = vsub.f32 %v1346, %v1364
        %v1369 = vsub.f32 %v1347, %v1365
        %v1370 = vmul.f32 %v1366, %v1366
        %v1371 = vmul.f32 %v1367, %v1367
        %v1372 = vmul.f32 %v1368, %v1368
        %v1373 = vmul.f32 %v1369, %v1369
        %v1374 = vsel %vm807, %v1370, 0.0
        %1375 = vadd.xlane.f32.xlu0 %v1374
        %v1376 = vpop.xlane.xlu0 %1375
        %v1377 = vsel %vm807, %v1371, 0.0
        %1378 = vadd.xlane.f32.xlu0 %v1377
        %v1379 = vpop.xlane.xlu0 %1378
        %v1380 = vsel %vm807, %v1372, 0.0
        %1381 = vadd.xlane.f32.xlu0 %v1380
        %v1382 = vpop.xlane.xlu0 %1381
        %v1383 = vsel %vm807, %v1373, 0.0
        %1384 = vadd.xlane.f32.xlu0 %v1383
        %v1385 = vpop.xlane.xlu0 %1384
        %v1386 = vmul.f32 %v1376, %v826
        %v1387 = vmul.f32 %v1379, %v826
        %v1388 = vmul.f32 %v1382, %v826
        %v1389 = vmul.f32 %v1385, %v826
        %v1390 = vadd.f32 %v1386, 1e-05
        %v1391 = vadd.f32 %v1387, 1e-05
        %v1392 = vadd.f32 %v1388, 1e-05
        %v1393 = vadd.f32 %v1389, 1e-05
        %v1394 = vrsqrt.pop %v1390
        %v1395 = vmul.f32 %v1394, %v1390
        %v1396 = vmul.f32 %v1395, %v1394
        %v1397 = vmul.f32 0.5, %v1396
        %v1398 = vsub.f32 1.5, %v1397
        %v1399 = vmul.f32 %v1394, %v1398
        %vm1400 = vweird.f32 %v1390
        %vm1401 = vweird.f32 %v1394
        %vm1402 = vmor %vm1400, %vm1401
        %v1403 = vsel %vm1402, %v1394, %v1399
        %v1404 = vrsqrt.pop %v1391
        %v1405 = vmul.f32 %v1404, %v1391
        %v1406 = vmul.f32 %v1405, %v1404
        %v1407 = vmul.f32 0.5, %v1406
        %v1408 = vsub.f32 1.5, %v1407
        %v1409 = vmul.f32 %v1404, %v1408
        %vm1410 = vweird.f32 %v1391
        %vm1411 = vweird.f32 %v1404
        %vm1412 = vmor %vm1410, %vm1411
        %v1413 = vsel %vm1412, %v1404, %v1409
        %v1414 = vrsqrt.pop %v1392
        %v1415 = vmul.f32 %v1414, %v1392
        %v1416 = vmul.f32 %v1415, %v1414
        %v1417 = vmul.f32 0.5, %v1416
        %v1418 = vsub.f32 1.5, %v1417
        %v1419 = vmul.f32 %v1414, %v1418
        %vm1420 = vweird.f32 %v1392
        %vm1421 = vweird.f32 %v1414
        %vm1422 = vmor %vm1420, %vm1421
        %v1423 = vsel %vm1422, %v1414, %v1419
        %v1424 = vrsqrt.pop %v1393
        %v1425 = vmul.f32 %v1424, %v1393
        %v1426 = vmul.f32 %v1425, %v1424
        %v1427 = vmul.f32 0.5, %v1426
        %v1428 = vsub.f32 1.5, %v1427
        %v1429 = vmul.f32 %v1424, %v1428
        %vm1430 = vweird.f32 %v1393
        %vm1431 = vweird.f32 %v1424
        %vm1432 = vmor %vm1430, %vm1431
        %v1433 = vsel %vm1432, %v1424, %v1429
        %v1434 = vmul.f32 %v1366, %v1403
        %v1435 = vmul.f32 %v1367, %v1413
        %v1436 = vmul.f32 %v1368, %v1423
        %v1437 = vmul.f32 %v1369, %v1433
        %v1439 = vperm.slane %v1348, 0
        %v1441 = vmul.f32 %v1434, %v1439
        %v1442 = vmul.f32 %v1435, %v1439
        %v1443 = vmul.f32 %v1436, %v1439
        %v1444 = vmul.f32 %v1437, %v1439
        %v1446 = vperm.slane %v1349, 0
        %v1448 = vadd.f32 %v1441, %v1446
        %v1449 = vadd.f32 %v1442, %v1446
        %v1450 = vadd.f32 %v1443, %v1446
        %v1451 = vadd.f32 %v1444, %v1446
        %v1452 = vpack.c.bf16 %v1449, %v1448
        %v1453 = vpack.c.bf16 %v1451, %v1450
        %v1454 = vld [vmem:[%s601] sm:$0xf]
        %v1455 = vld [vmem:[%s601 + $0x4] sm:$0xf]
        %v1456 = vld [vmem:[%s601 + $0x8] sm:$0xf]
        %v1457 = vld [vmem:[%s601 + $0xc] sm:$0xf]
        %v1458 = vld [vmem:[%s713] sm:$0x1]
        %v1460 = vperm.slane %v1458, 0
        %v1466 = vunpack.c.l.b16 %v1454
        %v1467 = vunpack.c.l.b16 %v1455
        %v1468 = vunpack.c.l.b16 %v1456
        %v1469 = vunpack.c.l.b16 %v1457
        %v1470 = vpack.c.b16 %v1467, %v1466
        %v1471 = vpack.c.b16 %v1469, %v1468
        %v1475 = vsel %vm807, %v1452, 0
        %v1478 = vsel %vm807, %v1453, 0
        %1480 = vmatpush.bf16.msra.mxu0 0
        %1481 = vmatpush.bf16.msra.mxu0 0
        %1482 = vmatpush.bf16.msra.mxu0 0
        %1483 = vmatpush.bf16.msra.mxu0 0
        %1484 = vmatpush.bf16.msra.mxu0 0
        %1485 = vmatpush.bf16.msra.mxu0 0
        %1486 = vmatpush.bf16.msra.mxu0 %v1471
        %1487 = vmatpush.bf16.msra.mxu0 %v1470
        %1488 = vmatmul.bf16.gmra.mxu0 %v1475
        %v1489 = vpop.f32.mrf.mxu0
        %v1490 = vadd.f32 %v1460, %v1489
        %v1491 = vpop.f32.mrf.mxu0
        %v1492 = vadd.f32 %v1460, %v1491
        %1493 = vmatmul.bf16.gmra.mxu0 %v1478
        %v1494 = vpop.f32.mrf.mxu0
        %v1495 = vadd.f32 %v1460, %v1494
        %v1496 = vpop.f32.mrf.mxu0
        %v1497 = vadd.f32 %v1460, %v1496
        %1498 = vdwg.mxu0
        %v1499 = vmul.f32 %v1490, 0.5
        %v1500 = vmul.f32 %v1492, 0.5
        %v1501 = vmul.f32 %v1495, 0.5
        %v1502 = vmul.f32 %v1497, 0.5
        %v1503 = vmul.f32 %v1490, 0.70710677
        %v1504 = vmul.f32 %v1492, 0.70710677
        %v1505 = vmul.f32 %v1495, 0.70710677
        %v1506 = vmul.f32 %v1497, 0.70710677
        %v1507 = vand.u32 2147483647, %v1503
        %v1508 = vand.u32 2147483647, %v1504
        %v1509 = vand.u32 2147483647, %v1505
        %v1510 = vand.u32 2147483647, %v1506
        %v1511 = vmul.f32 %v1507, 0.3275911
        %v1512 = vmul.f32 %v1508, 0.3275911
        %v1513 = vmul.f32 %v1509, 0.3275911
        %v1514 = vmul.f32 %v1510, 0.3275911
        %v1515 = vadd.f32 %v1511, 1.0
        %v1516 = vadd.f32 %v1512, 1.0
        %v1517 = vadd.f32 %v1513, 1.0
        %v1518 = vadd.f32 %v1514, 1.0
        %v1519 = vrcp.pop %v1515
        %v1520 = vrcp.pop %v1516
        %v1521 = vrcp.pop %v1517
        %v1522 = vrcp.pop %v1518
        %v1523 = vmul.f32 %v1519, 1.0614054
        %v1524 = vmul.f32 %v1520, 1.0614054
        %v1525 = vmul.f32 %v1521, 1.0614054
        %v1526 = vmul.f32 %v1522, 1.0614054
        %v1527 = vadd.f32 %v1523, -1.4531521
        %v1528 = vadd.f32 %v1524, -1.4531521
        %v1529 = vadd.f32 %v1525, -1.4531521
        %v1530 = vadd.f32 %v1526, -1.4531521
        %v1531 = vmul.f32 %v1527, %v1519
        %v1532 = vmul.f32 %v1528, %v1520
        %v1533 = vmul.f32 %v1529, %v1521
        %v1534 = vmul.f32 %v1530, %v1522
        %v1535 = vadd.f32 %v1531, 1.4214138
        %v1536 = vadd.f32 %v1532, 1.4214138
        %v1537 = vadd.f32 %v1533, 1.4214138
        %v1538 = vadd.f32 %v1534, 1.4214138
        %v1539 = vmul.f32 %v1535, %v1519
        %v1540 = vmul.f32 %v1536, %v1520
        %v1541 = vmul.f32 %v1537, %v1521
        %v1542 = vmul.f32 %v1538, %v1522
        %v1543 = vadd.f32 %v1539, -0.28449672
        %v1544 = vadd.f32 %v1540, -0.28449672
        %v1545 = vadd.f32 %v1541, -0.28449672
        %v1546 = vadd.f32 %v1542, -0.28449672
        %v1547 = vmul.f32 %v1543, %v1519
        %v1548 = vmul.f32 %v1544, %v1520
        %v1549 = vmul.f32 %v1545, %v1521
        %v1550 = vmul.f32 %v1546, %v1522
        %v1551 = vadd.f32 %v1547, 0.2548296
        %v1552 = vadd.f32 %v1548, 0.2548296
        %v1553 = vadd.f32 %v1549, 0.2548296
        %v1554 = vadd.f32 %v1550, 0.2548296
        %v1555 = vmul.f32 %v1551, %v1519
        %v1556 = vmul.f32 %v1552, %v1520
        %v1557 = vmul.f32 %v1553, %v1521
        %v1558 = vmul.f32 %v1554, %v1522
        %v1559 = vsub.f32 0.0, %v1507
        %v1560 = vsub.f32 0.0, %v1508
        %v1561 = vsub.f32 0.0, %v1509
        %v1562 = vsub.f32 0.0, %v1510
        %v1563 = vmul.f32 %v1559, %v1507
        %v1564 = vmul.f32 %v1560, %v1508
        %v1565 = vmul.f32 %v1561, %v1509
        %v1566 = vmul.f32 %v1562, %v1510
        %v1567 = vmul.f32 %v1563, 1.442695
        %v1568 = vpow.pop %v1567
        %v1569 = vmul.f32 %v1564, 1.442695
        %v1570 = vpow.pop %v1569
        %v1571 = vmul.f32 %v1565, 1.442695
        %v1572 = vpow.pop %v1571
        %v1573 = vmul.f32 %v1566, 1.442695
        %v1574 = vpow.pop %v1573
        %v1575 = vmul.f32 %v1555, %v1568
        %v1576 = vmul.f32 %v1556, %v1570
        %v1577 = vmul.f32 %v1557, %v1572
        %v1578 = vmul.f32 %v1558, %v1574
        %v1579 = vsub.f32 1.0, %v1575
        %v1580 = vsub.f32 1.0, %v1576
        %v1581 = vsub.f32 1.0, %v1577
        %v1582 = vsub.f32 1.0, %v1578
        %vm1583 = vcmp.ge.f32.partialorder %v1503, 0.0
        %vm1584 = vcmp.ge.f32.partialorder %v1504, 0.0
        %vm1585 = vcmp.ge.f32.partialorder %v1505, 0.0
        %vm1586 = vcmp.ge.f32.partialorder %v1506, 0.0
        %v1587 = vsub.f32 0.0, %v1579
        %v1588 = vsub.f32 0.0, %v1580
        %v1589 = vsub.f32 0.0, %v1581
        %v1590 = vsub.f32 0.0, %v1582
        %v1591 = vsel %vm1583, %v1579, %v1587
        %v1592 = vsel %vm1584, %v1580, %v1588
        %v1593 = vsel %vm1585, %v1581, %v1589
        %v1594 = vsel %vm1586, %v1582, %v1590
        %v1595 = vadd.f32 %v1591, 1.0
        %v1596 = vadd.f32 %v1592, 1.0
        %v1597 = vadd.f32 %v1593, 1.0
        %v1598 = vadd.f32 %v1594, 1.0
        %v1599 = vmul.f32 %v1499, %v1595
        %v1600 = vmul.f32 %v1500, %v1596
        %v1601 = vmul.f32 %v1501, %v1597
        %v1602 = vmul.f32 %v1502, %v1598
        %v1603 = vpack.c.bf16 %v1600, %v1599
        %v1604 = vpack.c.bf16 %v1602, %v1601
        %v1605 = vld [vmem:[%s718] sm:$0xf]
        %v1606 = vld [vmem:[%s718 + $0x4] sm:$0xf]
        %v1607 = vld [vmem:[%s718 + $0x8] sm:$0xf]
        %v1608 = vld [vmem:[%s718 + $0xc] sm:$0xf]
        %v1609 = vld [vmem:[%s718 + $0x10] sm:$0xf]
        %v1610 = vld [vmem:[%s718 + $0x14] sm:$0xf]
        %v1611 = vld [vmem:[%s718 + $0x18] sm:$0xf]
        %v1612 = vld [vmem:[%s718 + $0x1c] sm:$0xf]
        %v1613 = vld [vmem:[%s721] sm:$0x1]
        %v1615 = vperm.slane %v1613, 0
        %v1625 = vunpack.c.l.b16 %v1605
        %v1626 = vunpack.c.l.b16 %v1606
        %v1627 = vunpack.c.l.b16 %v1607
        %v1628 = vunpack.c.l.b16 %v1608
        %v1629 = vunpack.c.l.b16 %v1609
        %v1630 = vunpack.c.l.b16 %v1610
        %v1631 = vunpack.c.l.b16 %v1611
        %v1632 = vunpack.c.l.b16 %v1612
        %v1633 = vpack.c.b16 %v1626, %v1625
        %v1634 = vpack.c.b16 %v1628, %v1627
        %v1635 = vpack.c.b16 %v1630, %v1629
        %v1636 = vpack.c.b16 %v1632, %v1631
        %vm1641 = vcmask 523264
        %v1643 = vsel %vm1641, %v1603, 0
        %v1646 = vsel %vm1641, %v1604, 0
        %1648 = vmatpush.bf16.msra.mxu0 0
        %1649 = vmatpush.bf16.msra.mxu0 0
        %1650 = vmatpush.bf16.msra.mxu0 0
        %1651 = vmatpush.bf16.msra.mxu0 0
        %1652 = vmatpush.bf16.msra.mxu0 %v1636
        %1653 = vmatpush.bf16.msra.mxu0 %v1635
        %1654 = vmatpush.bf16.msra.mxu0 %v1634
        %1655 = vmatpush.bf16.msra.mxu0 %v1633
        %1656 = vmatmul.bf16.gmra.mxu0 %v1643
        %v1657 = vpop.f32.mrf.mxu0
        %v1658 = vadd.f32 %v1615, %v1657
        %v1659 = vpop.f32.mrf.mxu0
        %v1660 = vadd.f32 %v1615, %v1659
        %1661 = vmatmul.bf16.gmra.mxu0 %v1646
        %v1662 = vpop.f32.mrf.mxu0
        %v1663 = vadd.f32 %v1615, %v1662
        %v1664 = vpop.f32.mrf.mxu0
        %v1665 = vadd.f32 %v1615, %v1664
        %1666 = vdwg.mxu0
        %v1667 = vadd.f32 %v1344, %v1658
        %v1668 = vadd.f32 %v1345, %v1660
        %v1669 = vadd.f32 %v1346, %v1663
        %v1670 = vadd.f32 %v1347, %v1665
        %1671 = vst.msk [vmem:[#allocation2] sm:$0xff] %vm807, %v1667
        %1672 = vst.msk [vmem:[#allocation2 + $0x8] sm:$0xff] %vm807, %v1668
        %1673 = vst.msk [vmem:[#allocation2 + $0x10] sm:$0xff] %vm807, %v1669
        %1674 = vst.msk [vmem:[#allocation2 + $0x18] sm:$0xff] %vm807, %v1670
        %p1675 = scmp.eq.s32.totalorder %s38, 1
        // Predicated region
        $region93: #{tpu_custom_call.1} parent=79 // pred_check
          %p1676 = pneg %p1675
        $region94: #{tpu_custom_call.1} parent=79 // pred_check_branch
          %1678 = sbr.rel (%p1676) target = $region96
        $region95: #{tpu_custom_call.1} parent=79 // pred_region
          %v1679 = vpack.c.bf16 %v1667, %v1667
          %v1680 = vpack.c.bf16 %v1668, %v1668
          %v1681 = vpack.c.bf16 %v1669, %v1669
          %v1682 = vpack.c.bf16 %v1670, %v1670
          %vm1683 = vcmask 257024
          %1684 = vst.msk [vmem:[#allocation8] sm:$0xf] %vm1683, %v1679
          %1685 = vst.msk [vmem:[#allocation8 + $0x4] sm:$0xf] %vm1683, %v1680
          %1686 = vst.msk [vmem:[#allocation8 + $0x8] sm:$0xf] %vm1683, %v1681
          %1687 = vst.msk [vmem:[#allocation8 + $0xc] sm:$0xf] %vm1683, %v1682
        $region96: #{tpu_custom_call.1} parent=79 // pred_fallthru
          _
        // Predicated region
        $region97: #{tpu_custom_call.1} parent=79 // pred_check
          %p1688 = pneg %p438
        $region98: #{tpu_custom_call.1} parent=79 // pred_check_branch
          %1690 = sbr.rel (%p1688) target = $region100
        $region99: #{tpu_custom_call.1} parent=79 // pred_region
          %s1691 = smul.u32 4, %s37
          %1693 = vsyncadd [#allocation5], 0
          %s1694 = smul.addr %s1691, 4
          %s1695 = scalar_lea.hbm %s15, %s1694
          %s1696 = sshll.u32 [#allocation8], 4
          %s1697 = int_to_ptr.vmem [resolvable:$true] %s1696
          %s1698 = sshll.u32 %s1695, 4
          %s1699 = int_to_ptr.hbm [resolvable:$true] %s1698
          %1704 = dma.vmem_to_hbm [thread:$0]  %s1697, 256, %s1699, [#allocation5], 64, 64, 4
        $region100: #{tpu_custom_call.1} parent=79 // pred_fallthru
          _
        // Predicated region
        $region101: #{tpu_custom_call.1} parent=79 // pred_check
          %p1705 = pneg %p438
        $region102: #{tpu_custom_call.1} parent=79 // pred_check_branch
          %1707 = sbr.rel (%p1705) target = $region104
        $region103: #{tpu_custom_call.1} parent=79 // pred_region
          %1709 = dma.done [#allocation5], 256
        $region104: #{tpu_custom_call.1} parent=79 // pred_fallthru
          _
      $region80: #{tpu_custom_call.1} parent=5 // pred_fallthru
        _
      %p1710 = scmp.le.s32.totalorder 2, %s28
      // Predicated region
      $region105: #{tpu_custom_call.1} parent=5 // pred_check
        %p1711 = pneg %p1710
      $region106: #{tpu_custom_call.1} parent=5 // pred_check_branch
        %1713 = sbr.rel (%p1711) target = $region108
      $region107: #{tpu_custom_call.1} parent=5 // pred_region
        %s1714 = ssub.s32 %s28, 2
      $region108: #{tpu_custom_call.1} parent=5 // pred_fallthru
        _
    $region6: #{tpu_custom_call.1} parent=1 // loop_footer
      %s32 = sadd.s32 1, %s28
    $region7: #{tpu_custom_call.1} parent=1 // loop_footer_branch
      %27 = sbr.rel target = $region3
    $region8: #{tpu_custom_call.1} parent=1 // loop_exit
      _
    %1715 = vsyncpa [#allocation4], 1
    %s1716 = scalar_lea.sflag [#allocation4], 1
    %1717 = vsyncpa %s1716, 1
    %1718 = vsyncpa [#allocation7], 1
    %s1719 = scalar_lea.sflag [#allocation7], 1
    %1720 = vsyncpa %s1719, 1
    %1721 = vsyncpa [#allocation5], 1
    %s1722 = scalar_lea.sflag [#allocation5], 1
    %1723 = vsyncpa %s1722, 1

</llo_original>
